<compile_context>
chip_gen: v5e
topology: v5e:2x2
jax: 0.10.0
libtpu: 0.0.40
codegen_flags: <defaults>
</compile_context>

<pallas_src>
import functools

import jax
import jax.numpy as jnp
from jax.experimental import pallas as pl
from jax.experimental.pallas import tpu as pltpu


# ---------------------------------------------------------------------------
# Shared tail: pointwise 1x1 (bf16 MXU, f32 accumulation) + BN partial sums + store.
# ---------------------------------------------------------------------------
def _pw_and_stats(acc, wpw_ref, y_ref, st_ref):
    Ho, Wo, Cin = acc.shape
    y = jnp.dot(
        acc.reshape(Ho * Wo, Cin).astype(jnp.bfloat16),
        wpw_ref[...].astype(jnp.bfloat16),
        preferred_element_type=jnp.float32,
    )  # (Ho*Wo, C_stage_out), f32 accumulation on the MXU
    st_ref[0, 0:1, :] = jnp.sum(y, axis=0, keepdims=True)
    st_ref[0, 1:2, :] = jnp.sum(y * y, axis=0, keepdims=True)
    y_ref[0] = y.reshape(Ho, Wo, y.shape[1]).astype(y_ref.dtype)


# ---------------------------------------------------------------------------
# Kernel A: fused depthwise 3x3 stride-2 (space-to-depth) + 1x1 + BN partial stats.
#   xs_ref : (1, Ho, Wo, 4*Cin)  where last dim is (row_parity, col_parity, c)
#   wdw_ref: (9, Cin)            depthwise taps, [ki*3+kj, c]
#   wpw_ref: (Cin, Cin)
#   y_ref  : (1, Ho, Wo, Cin)    pre-BN output (bf16)
#   st_ref : (1, 2, Cin)         per-image [sum, sum_sq]
#   pad_ref: (Ho+1, Wo+1, 4*Cin) VMEM scratch; zero border == conv zero padding
# ---------------------------------------------------------------------------
def _stage1_kernel(xs_ref, wdw_ref, wpw_ref, y_ref, st_ref, pad_ref, *, Ho, Wo, Cin):
    pad_ref[...] = jnp.zeros(pad_ref.shape, pad_ref.dtype)
    pad_ref[1:Ho + 1, 1:Wo + 1, :] = xs_ref[0].astype(jnp.float32)

    acc = jnp.zeros((Ho, Wo, Cin), jnp.float32)
    for ki in range(3):
        hs = 0 if ki == 0 else 1        # -1 / 0 block shift in the s2d row axis
        pi = (ki + 1) % 2               # input-row parity this tap reads
        for kj in range(3):
            ws = 0 if kj == 0 else 1
            pj = (kj + 1) % 2
            cs = (pi * 2 + pj) * Cin    # channel group of that (parity, parity) plane
            tap = pad_ref[hs:hs + Ho, ws:ws + Wo, cs:cs + Cin]
            acc = acc + tap * wdw_ref[ki * 3 + kj, :]

    _pw_and_stats(acc, wpw_ref, y_ref, st_ref)


# ---------------------------------------------------------------------------
# Kernel B: fused BN1+ReLU + depthwise 3x3 stride-1 + 1x1 + BN partial stats.
# ---------------------------------------------------------------------------
def _stage2_kernel(y1_ref, sc_ref, sh_ref, wdw_ref, wpw_ref, y_ref, st_ref, pad_ref,
                   *, Ho, Wo, Cin):
    x = y1_ref[0].astype(jnp.float32)
    x = jnp.maximum(x * sc_ref[0, :] + sh_ref[0, :], 0.0)      # BN1 + ReLU (folded affine)

    pad_ref[...] = jnp.zeros(pad_ref.shape, pad_ref.dtype)
    pad_ref[1:Ho + 1, 1:Wo + 1, :] = x

    acc = jnp.zeros((Ho, Wo, Cin), jnp.float32)
    for ki in range(3):
        for kj in range(3):
            acc = acc + pad_ref[ki:ki + Ho, kj:kj + Wo, :] * wdw_ref[ki * 3 + kj, :]

    _pw_and_stats(acc, wpw_ref, y_ref, st_ref)


# ---------------------------------------------------------------------------
# Kernel C: BN2 + ReLU (folded affine), elementwise.
# ---------------------------------------------------------------------------
def _bn_relu_kernel(y_ref, sc_ref, sh_ref, o_ref):
    y = y_ref[0].astype(jnp.float32)
    o_ref[0] = jnp.maximum(y * sc_ref[0, :] + sh_ref[0, :], 0.0)


# ---------------------------------------------------------------------------
# Wrapper
# ---------------------------------------------------------------------------
def _bn_fold(partial_stats, gamma, beta, count, eps):
    # partial_stats: (N, 2, C) per-block [sum, sum_sq]  ->  folded BN scale/shift (1, C)
    tot = jnp.sum(partial_stats, axis=0)
    mean = tot[0] / count
    var = tot[1] / count - mean * mean          # biased variance (BN training mode)
    inv = jax.lax.rsqrt(var + eps)
    scale = gamma.reshape(-1) * inv
    shift = beta.reshape(-1) - mean * scale
    return (scale.reshape(1, -1).astype(jnp.float32),
            shift.reshape(1, -1).astype(jnp.float32))


def sepconv_forward(x_nchw, p, *, eps=1e-5, inter_dtype=jnp.bfloat16):
    N, Cin, H, W = x_nchw.shape
    # TODO(synk): odd H/W (PyTorch floor output-size semantics) would need an extra
    # bottom/right row/col in the space-to-depth transform; only even H/W handled here.
    assert H % 2 == 0 and W % 2 == 0
    Ho, Wo = H // 2, W // 2
    Cout = p["w_pw2"].shape[1]
    par = pltpu.CompilerParams(dimension_semantics=("parallel",))

    # NCHW -> space-to-depth NHWC (N, Ho, Wo, 4*Cin): folds the stride-2 subsample and the
    # layout change into the single unavoidable boundary transpose (no jnp.pad, no stride-1
    # over-compute, denser lane axis than raw Cin).
    xs = x_nchw.astype(jnp.float32).reshape(N, Cin, Ho, 2, Wo, 2)
    xs = jnp.transpose(xs, (0, 2, 4, 3, 5, 1)).reshape(N, Ho, Wo, 4 * Cin)

    # ---- Stage 1: dw1(stride2) + pw1 + partial BN stats -------------------
    y1, st1 = pl.pallas_call(
        functools.partial(_stage1_kernel, Ho=Ho, Wo=Wo, Cin=Cin),
        grid=(N,),
        in_specs=[
            pl.BlockSpec((1, Ho, Wo, 4 * Cin), lambda n: (n, 0, 0, 0)),
            pl.BlockSpec((9, Cin), lambda n: (0, 0)),
            pl.BlockSpec((Cin, Cin), lambda n: (0, 0)),
        ],
        out_specs=(
            pl.BlockSpec((1, Ho, Wo, Cin), lambda n: (n, 0, 0, 0)),
            pl.BlockSpec((1, 2, Cin), lambda n: (n, 0, 0)),
        ),
        out_shape=(
            jax.ShapeDtypeStruct((N, Ho, Wo, Cin), inter_dtype),
            jax.ShapeDtypeStruct((N, 2, Cin), jnp.float32),
        ),
        scratch_shapes=[pltpu.VMEM((Ho + 1, Wo + 1, 4 * Cin), jnp.float32)],
        compiler_params=par,
    )(xs, p["w_dw1"], p["w_pw1"])

    scale1, shift1 = _bn_fold(st1, p["gamma1"], p["beta1"], N * Ho * Wo, eps)

    # ---- Stage 2: BN1+ReLU + dw2(stride1) + pw2 + partial BN stats --------
    y2, st2 = pl.pallas_call(
        functools.partial(_stage2_kernel, Ho=Ho, Wo=Wo, Cin=Cin),
        grid=(N,),
        in_specs=[
            pl.BlockSpec((1, Ho, Wo, Cin), lambda n: (n, 0, 0, 0)),
            pl.BlockSpec((1, Cin), lambda n: (0, 0)),
            pl.BlockSpec((1, Cin), lambda n: (0, 0)),
            pl.BlockSpec((9, Cin), lambda n: (0, 0)),
            pl.BlockSpec((Cin, Cout), lambda n: (0, 0)),
        ],
        out_specs=(
            pl.BlockSpec((1, Ho, Wo, Cout), lambda n: (n, 0, 0, 0)),
            pl.BlockSpec((1, 2, Cout), lambda n: (n, 0, 0)),
        ),
        out_shape=(
            jax.ShapeDtypeStruct((N, Ho, Wo, Cout), inter_dtype),
            jax.ShapeDtypeStruct((N, 2, Cout), jnp.float32),
        ),
        scratch_shapes=[pltpu.VMEM((Ho + 2, Wo + 2, Cin), jnp.float32)],
        compiler_params=par,
    )(y1, scale1, shift1, p["w_dw2"], p["w_pw2"])

    scale2, shift2 = _bn_fold(st2, p["gamma2"], p["beta2"], N * Ho * Wo, eps)

    # ---- Stage 3: BN2 + ReLU ----------------------------------------------
    out = pl.pallas_call(
        _bn_relu_kernel,
        grid=(N,),
        in_specs=[
            pl.BlockSpec((1, Ho, Wo, Cout), lambda n: (n, 0, 0, 0)),
            pl.BlockSpec((1, Cout), lambda n: (0, 0)),
            pl.BlockSpec((1, Cout), lambda n: (0, 0)),
        ],
        out_specs=pl.BlockSpec((1, Ho, Wo, Cout), lambda n: (n, 0, 0, 0)),
        out_shape=jax.ShapeDtypeStruct((N, Ho, Wo, Cout), jnp.float32),
        compiler_params=par,
    )(y2, scale2, shift2)

    return jnp.transpose(out, (0, 3, 1, 2))   # NHWC -> NCHW boundary layout


# ---------------------------------------------------------------------------
# Pure-JAX f32 reference (lax conv, full precision) for the correctness check
# ---------------------------------------------------------------------------
def ref_forward(x_nchw, p, eps=1e-5):
    x = jnp.transpose(x_nchw, (0, 2, 3, 1)).astype(jnp.float32)

    def dw(v, wflat, stride):
        C = v.shape[-1]
        k = wflat.reshape(3, 3, 1, C)
        return jax.lax.conv_general_dilated(
            v, k, (stride, stride), ((1, 1), (1, 1)),
            dimension_numbers=("NHWC", "HWIO", "NHWC"),
            feature_group_count=C,
            precision=jax.lax.Precision.HIGHEST,
        )

    def pw_bn_relu(v, w, g, b):
        y = jnp.einsum("nhwc,cd->nhwd", v, w, precision=jax.lax.Precision.HIGHEST)
        mean = y.mean(axis=(0, 1, 2), keepdims=True)
        var = jnp.square(y - mean).mean(axis=(0, 1, 2), keepdims=True)
        yhat = (y - mean) * jax.lax.rsqrt(var + eps)
        return jnp.maximum(yhat * g.reshape(1, 1, 1, -1) + b.reshape(1, 1, 1, -1), 0.0)

    y = pw_bn_relu(dw(x, p["w_dw1"], 2), p["w_pw1"], p["gamma1"], p["beta1"])
    z = pw_bn_relu(dw(y, p["w_dw2"], 1), p["w_pw2"], p["gamma2"], p["beta2"])
    return jnp.transpose(z, (0, 3, 1, 2))


def init_params(key, channel_in, channel_out):
    k1, k2, k3, k4 = jax.random.split(key, 4)
    return {
        # depthwise weights flattened to (9, C): [ki*3+kj, c]
        "w_dw1": 0.5 * jax.random.normal(k1, (9, channel_in), jnp.float32),
        "w_dw2": 0.5 * jax.random.normal(k3, (9, channel_in), jnp.float32),
        # pointwise weights as (Cin, Cout) matmul matrices
        "w_pw1": 0.5 * jax.random.normal(k2, (channel_in, channel_in), jnp.float32),
        "w_pw2": 0.5 * jax.random.normal(k4, (channel_in, channel_out), jnp.float32),
        # BatchNorm affine params (PyTorch init: gamma=1, beta=0)
        "gamma1": jnp.ones((1, channel_in), jnp.float32),
        "beta1": jnp.zeros((1, channel_in), jnp.float32),
        "gamma2": jnp.ones((1, channel_out), jnp.float32),
        "beta2": jnp.zeros((1, channel_out), jnp.float32),
    }


if __name__ == "__main__":
    key = jax.random.PRNGKey(0)
    kx, kp = jax.random.split(key)

    N, Cin, H, W = 2, 4, 16, 16
    Cout = 8
    x = jax.random.normal(kx, (N, Cin, H, W), jnp.float32)
    params = init_params(kp, Cin, Cout)

    fwd = jax.jit(sepconv_forward)
    out = jax.block_until_ready(fwd(x, params))
    assert out.shape == (N, Cout, H // 2, W // 2), out.shape

    ref = jax.block_until_ready(ref_forward(x, params))
    max_err = float(jnp.max(jnp.abs(out - ref)))
    # Tolerance reflects bf16 intermediates + single-pass bf16 MXU vs a HIGHEST-precision
    # f32 reference; real layout/tap bugs would produce O(1) errors, far above this.
    assert jnp.allclose(out, ref, atol=3e-2, rtol=3e-2), max_err

    print("KERNEL_OK")
</pallas_src>

<mosaic_0001>
module attributes {stable_mosaic.version = 11 : i64} {
  func.func @_stage1_kernel(%arg0: i32, %arg1: memref<1x8x8x16xf32, #tpu.memory_space<vmem>>, %arg2: memref<9x4xf32, #tpu.memory_space<vmem>>, %arg3: memref<4x4xf32, #tpu.memory_space<vmem>>, %arg4: memref<1x8x8x4xbf16, #tpu.memory_space<vmem>>, %arg5: memref<1x2x4xf32, #tpu.memory_space<vmem>>, %arg6: memref<9x9x16xf32, #tpu.memory_space<vmem>>) attributes {dimension_semantics = [#tpu.dimension_semantics<parallel>], iteration_bounds = array<i64: 2>, scalar_prefetch = 0 : i64, scratch_operands = 1 : i64, tpu.core_type = #tpu.core_type<tc>, window_params = [{transform_indices = @transform_0, window_bounds = array<i64: 1, 8, 8, 16>}, {pipeline_mode = #tpu.pipeline_mode<synchronous>, transform_indices = @transform_1, window_bounds = array<i64: 9, 4>}, {pipeline_mode = #tpu.pipeline_mode<synchronous>, transform_indices = @transform_2, window_bounds = array<i64: 4, 4>}, {transform_indices = @transform_3, window_bounds = array<i64: 1, 8, 8, 4>}, {transform_indices = @transform_4, window_bounds = array<i64: 1, 2, 4>}]} {
    %cst = arith.constant 0.000000e+00 : f32
    %0 = vector.broadcast %cst : f32 to vector<9x9x16xf32>
    %c0 = arith.constant 0 : index
    %c0_0 = arith.constant 0 : index
    %c0_1 = arith.constant 0 : index
    %1 = vector.load %arg6[%c0, %c0_0, %c0_1] : memref<9x9x16xf32, #tpu.memory_space<vmem>>, vector<9x9x16xf32>
    tpu.vector_store %arg6[%c0, %c0_0, %c0_1], %0 {strides = array<i32>} : memref<9x9x16xf32, #tpu.memory_space<vmem>>, vector<9x9x16xf32>,
    %c0_2 = arith.constant 0 : index
    %c0_3 = arith.constant 0 : index
    %c0_4 = arith.constant 0 : index
    %c0_5 = arith.constant 0 : index
    %2 = vector.load %arg1[%c0_2, %c0_3, %c0_4, %c0_5] : memref<1x8x8x16xf32, #tpu.memory_space<vmem>>, vector<1x8x8x16xf32>
    %3 = vector.shape_cast %2 : vector<1x8x8x16xf32> to vector<8x8x16xf32>
    %c1 = arith.constant 1 : index
    %c1_6 = arith.constant 1 : index
    %c0_7 = arith.constant 0 : index
    %4 = vector.load %arg6[%c1, %c1_6, %c0_7] : memref<9x9x16xf32, #tpu.memory_space<vmem>>, vector<8x8x16xf32>
    tpu.vector_store %arg6[%c1, %c1_6, %c0_7], %3 {strides = array<i32>} : memref<9x9x16xf32, #tpu.memory_space<vmem>>, vector<8x8x16xf32>,
    %cst_8 = arith.constant 0.000000e+00 : f32
    %5 = vector.broadcast %cst_8 : f32 to vector<8x8x4xf32>
    %c0_9 = arith.constant 0 : index
    %c0_10 = arith.constant 0 : index
    %c12 = arith.constant 12 : index
    %6 = vector.load %arg6[%c0_9, %c0_10, %c12] : memref<9x9x16xf32, #tpu.memory_space<vmem>>, vector<8x8x4xf32>
    %c0_11 = arith.constant 0 : index
    %c0_12 = arith.constant 0 : index
    %7 = vector.load %arg2[%c0_11, %c0_12] : memref<9x4xf32, #tpu.memory_space<vmem>>, vector<1x4xf32>
    %8 = vector.shape_cast %7 : vector<1x4xf32> to vector<4xf32>
    %9 = vector.shape_cast %8 : vector<4xf32> to vector<1x1x4xf32>
    %10 = vector.broadcast %9 : vector<1x1x4xf32> to vector<8x8x4xf32>
    %11 = arith.mulf %6, %10 : vector<8x8x4xf32>
    %12 = arith.addf %5, %11 : vector<8x8x4xf32>
    %c0_13 = arith.constant 0 : index
    %c1_14 = arith.constant 1 : index
    %c8 = arith.constant 8 : index
    %13 = vector.load %arg6[%c0_13, %c1_14, %c8] : memref<9x9x16xf32, #tpu.memory_space<vmem>>, vector<8x8x4xf32>
    %c1_15 = arith.constant 1 : index
    %c0_16 = arith.constant 0 : index
    %14 = vector.load %arg2[%c1_15, %c0_16] : memref<9x4xf32, #tpu.memory_space<vmem>>, vector<1x4xf32>
    %15 = vector.shape_cast %14 : vector<1x4xf32> to vector<4xf32>
    %16 = vector.shape_cast %15 : vector<4xf32> to vector<1x1x4xf32>
    %17 = vector.broadcast %16 : vector<1x1x4xf32> to vector<8x8x4xf32>
    %18 = arith.mulf %13, %17 : vector<8x8x4xf32>
    %19 = arith.addf %12, %18 : vector<8x8x4xf32>
    %c0_17 = arith.constant 0 : index
    %c1_18 = arith.constant 1 : index
    %c12_19 = arith.constant 12 : index
    %20 = vector.load %arg6[%c0_17, %c1_18, %c12_19] : memref<9x9x16xf32, #tpu.memory_space<vmem>>, vector<8x8x4xf32>
    %c2 = arith.constant 2 : index
    %c0_20 = arith.constant 0 : index
    %21 = vector.load %arg2[%c2, %c0_20] : memref<9x4xf32, #tpu.memory_space<vmem>>, vector<1x4xf32>
    %22 = vector.shape_cast %21 : vector<1x4xf32> to vector<4xf32>
    %23 = vector.shape_cast %22 : vector<4xf32> to vector<1x1x4xf32>
    %24 = vector.broadcast %23 : vector<1x1x4xf32> to vector<8x8x4xf32>
    %25 = arith.mulf %20, %24 : vector<8x8x4xf32>
    %26 = arith.addf %19, %25 : vector<8x8x4xf32>
    %c1_21 = arith.constant 1 : index
    %c0_22 = arith.constant 0 : index
    %c4 = arith.constant 4 : index
    %27 = vector.load %arg6[%c1_21, %c0_22, %c4] : memref<9x9x16xf32, #tpu.memory_space<vmem>>, vector<8x8x4xf32>
    %c3 = arith.constant 3 : index
    %c0_23 = arith.constant 0 : index
    %28 = vector.load %arg2[%c3, %c0_23] : memref<9x4xf32, #tpu.memory_space<vmem>>, vector<1x4xf32>
    %29 = vector.shape_cast %28 : vector<1x4xf32> to vector<4xf32>
    %30 = vector.shape_cast %29 : vector<4xf32> to vector<1x1x4xf32>
    %31 = vector.broadcast %30 : vector<1x1x4xf32> to vector<8x8x4xf32>
    %32 = arith.mulf %27, %31 : vector<8x8x4xf32>
    %33 = arith.addf %26, %32 : vector<8x8x4xf32>
    %c1_24 = arith.constant 1 : index
    %c1_25 = arith.constant 1 : index
    %c0_26 = arith.constant 0 : index
    %34 = vector.load %arg6[%c1_24, %c1_25, %c0_26] : memref<9x9x16xf32, #tpu.memory_space<vmem>>, vector<8x8x4xf32>
    %c4_27 = arith.constant 4 : index
    %c0_28 = arith.constant 0 : index
    %35 = vector.load %arg2[%c4_27, %c0_28] : memref<9x4xf32, #tpu.memory_space<vmem>>, vector<1x4xf32>
    %36 = vector.shape_cast %35 : vector<1x4xf32> to vector<4xf32>
    %37 = vector.shape_cast %36 : vector<4xf32> to vector<1x1x4xf32>
    %38 = vector.broadcast %37 : vector<1x1x4xf32> to vector<8x8x4xf32>
    %39 = arith.mulf %34, %38 : vector<8x8x4xf32>
    %40 = arith.addf %33, %39 : vector<8x8x4xf32>
    %c1_29 = arith.constant 1 : index
    %c1_30 = arith.constant 1 : index
    %c4_31 = arith.constant 4 : index
    %41 = vector.load %arg6[%c1_29, %c1_30, %c4_31] : memref<9x9x16xf32, #tpu.memory_space<vmem>>, vector<8x8x4xf32>
    %c5 = arith.constant 5 : index
    %c0_32 = arith.constant 0 : index
    %42 = vector.load %arg2[%c5, %c0_32] : memref<9x4xf32, #tpu.memory_space<vmem>>, vector<1x4xf32>
    %43 = vector.shape_cast %42 : vector<1x4xf32> to vector<4xf32>
    %44 = vector.shape_cast %43 : vector<4xf32> to vector<1x1x4xf32>
    %45 = vector.broadcast %44 : vector<1x1x4xf32> to vector<8x8x4xf32>
    %46 = arith.mulf %41, %45 : vector<8x8x4xf32>
    %47 = arith.addf %40, %46 : vector<8x8x4xf32>
    %c1_33 = arith.constant 1 : index
    %c0_34 = arith.constant 0 : index
    %c12_35 = arith.constant 12 : index
    %48 = vector.load %arg6[%c1_33, %c0_34, %c12_35] : memref<9x9x16xf32, #tpu.memory_space<vmem>>, vector<8x8x4xf32>
    %c6 = arith.constant 6 : index
    %c0_36 = arith.constant 0 : index
    %49 = vector.load %arg2[%c6, %c0_36] : memref<9x4xf32, #tpu.memory_space<vmem>>, vector<1x4xf32>
    %50 = vector.shape_cast %49 : vector<1x4xf32> to vector<4xf32>
    %51 = vector.shape_cast %50 : vector<4xf32> to vector<1x1x4xf32>
    %52 = vector.broadcast %51 : vector<1x1x4xf32> to vector<8x8x4xf32>
    %53 = arith.mulf %48, %52 : vector<8x8x4xf32>
    %54 = arith.addf %47, %53 : vector<8x8x4xf32>
    %c1_37 = arith.constant 1 : index
    %c1_38 = arith.constant 1 : index
    %c8_39 = arith.constant 8 : index
    %55 = vector.load %arg6[%c1_37, %c1_38, %c8_39] : memref<9x9x16xf32, #tpu.memory_space<vmem>>, vector<8x8x4xf32>
    %c7 = arith.constant 7 : index
    %c0_40 = arith.constant 0 : index
    %56 = vector.load %arg2[%c7, %c0_40] : memref<9x4xf32, #tpu.memory_space<vmem>>, vector<1x4xf32>
    %57 = vector.shape_cast %56 : vector<1x4xf32> to vector<4xf32>
    %58 = vector.shape_cast %57 : vector<4xf32> to vector<1x1x4xf32>
    %59 = vector.broadcast %58 : vector<1x1x4xf32> to vector<8x8x4xf32>
    %60 = arith.mulf %55, %59 : vector<8x8x4xf32>
    %61 = arith.addf %54, %60 : vector<8x8x4xf32>
    %c1_41 = arith.constant 1 : index
    %c1_42 = arith.constant 1 : index
    %c12_43 = arith.constant 12 : index
    %62 = vector.load %arg6[%c1_41, %c1_42, %c12_43] : memref<9x9x16xf32, #tpu.memory_space<vmem>>, vector<8x8x4xf32>
    %c8_44 = arith.constant 8 : index
    %c0_45 = arith.constant 0 : index
    %63 = vector.load %arg2[%c8_44, %c0_45] : memref<9x4xf32, #tpu.memory_space<vmem>>, vector<1x4xf32>
    %64 = vector.shape_cast %63 : vector<1x4xf32> to vector<4xf32>
    %65 = vector.shape_cast %64 : vector<4xf32> to vector<1x1x4xf32>
    %66 = vector.broadcast %65 : vector<1x1x4xf32> to vector<8x8x4xf32>
    %67 = arith.mulf %62, %66 : vector<8x8x4xf32>
    %68 = arith.addf %61, %67 : vector<8x8x4xf32>
    %69 = vector.shape_cast %68 : vector<8x8x4xf32> to vector<64x4xf32>
    %70 = arith.truncf %69 : vector<64x4xf32> to vector<64x4xbf16>
    %c0_46 = arith.constant 0 : index
    %c0_47 = arith.constant 0 : index
    %71 = vector.load %arg3[%c0_46, %c0_47] : memref<4x4xf32, #tpu.memory_space<vmem>>, vector<4x4xf32>
    %72 = arith.truncf %71 : vector<4x4xf32> to vector<4x4xbf16>
    %cst_48 = arith.constant dense<0.000000e+00> : vector<64x4xf32>
    %73 = tpu.matmul %70, %72, %cst_48 {dimension_numbers = #tpu.dot_dimension_numbers<[1], [0], [0], [1], [0, 0, 1, 1], [], []>} : vector<64x4xbf16>, vector<4x4xbf16>, vector<64x4xf32> -> vector<64x4xf32>
    %cst_49 = arith.constant dense<0.000000e+00> : vector<4xf32>
    %74 = vector.multi_reduction <add>, %73, %cst_49 [0] : vector<64x4xf32> to vector<4xf32>
    %75 = vector.shape_cast %74 : vector<4xf32> to vector<1x4xf32>
    %c0_50 = arith.constant 0 : index
    %c0_51 = arith.constant 0 : index
    %c0_52 = arith.constant 0 : index
    %76 = vector.load %arg5[%c0_50, %c0_51, %c0_52] : memref<1x2x4xf32, #tpu.memory_space<vmem>>, vector<1x1x4xf32>
    %77 = vector.shape_cast %76 : vector<1x1x4xf32> to vector<1x4xf32>
    %78 = vector.shape_cast %75 : vector<1x4xf32> to vector<1x1x4xf32>
    tpu.vector_store %arg5[%c0_50, %c0_51, %c0_52], %78 {strides = array<i32>} : memref<1x2x4xf32, #tpu.memory_space<vmem>>, vector<1x1x4xf32>,
    %79 = arith.mulf %73, %73 : vector<64x4xf32>
    %cst_53 = arith.constant dense<0.000000e+00> : vector<4xf32>
    %80 = vector.multi_reduction <add>, %79, %cst_53 [0] : vector<64x4xf32> to vector<4xf32>
    %81 = vector.shape_cast %80 : vector<4xf32> to vector<1x4xf32>
    %c0_54 = arith.constant 0 : index
    %c1_55 = arith.constant 1 : index
    %c0_56 = arith.constant 0 : index
    %82 = vector.load %arg5[%c0_54, %c1_55, %c0_56] : memref<1x2x4xf32, #tpu.memory_space<vmem>>, vector<1x1x4xf32>
    %83 = vector.shape_cast %82 : vector<1x1x4xf32> to vector<1x4xf32>
    %84 = vector.shape_cast %81 : vector<1x4xf32> to vector<1x1x4xf32>
    tpu.vector_store %arg5[%c0_54, %c1_55, %c0_56], %84 {strides = array<i32>} : memref<1x2x4xf32, #tpu.memory_space<vmem>>, vector<1x1x4xf32>,
    %85 = vector.shape_cast %73 : vector<64x4xf32> to vector<8x8x4xf32>
    %86 = arith.truncf %85 : vector<8x8x4xf32> to vector<8x8x4xbf16>
    %c0_57 = arith.constant 0 : index
    %c0_58 = arith.constant 0 : index
    %c0_59 = arith.constant 0 : index
    %c0_60 = arith.constant 0 : index
    %87 = vector.load %arg4[%c0_57, %c0_58, %c0_59, %c0_60] : memref<1x8x8x4xbf16, #tpu.memory_space<vmem>>, vector<1x8x8x4xbf16>
    %88 = vector.shape_cast %87 : vector<1x8x8x4xbf16> to vector<8x8x4xbf16>
    %89 = vector.shape_cast %86 : vector<8x8x4xbf16> to vector<1x8x8x4xbf16>
    tpu.vector_store %arg4[%c0_57, %c0_58, %c0_59, %c0_60], %89 {strides = array<i32>} : memref<1x8x8x4xbf16, #tpu.memory_space<vmem>>, vector<1x8x8x4xbf16>,
    return
  }
  func.func @transform_0(%arg0: i32) -> (i32, i32, i32, i32) {
    %c0_i32 = arith.constant 0 : i32
    %c0_i32_0 = arith.constant 0 : i32
    %c0_i32_1 = arith.constant 0 : i32
    %c0_i32_2 = arith.constant 0 : i32
    return %arg0, %c0_i32, %c0_i32_0, %c0_i32_1 : i32, i32, i32, i32
  }
  func.func @transform_1(%arg0: i32) -> (i32, i32) {
    %c0_i32 = arith.constant 0 : i32
    %c0_i32_0 = arith.constant 0 : i32
    %c0_i32_1 = arith.constant 0 : i32
    return %c0_i32, %c0_i32_0 : i32, i32
  }
  func.func @transform_2(%arg0: i32) -> (i32, i32) {
    %c0_i32 = arith.constant 0 : i32
    %c0_i32_0 = arith.constant 0 : i32
    %c0_i32_1 = arith.constant 0 : i32
    return %c0_i32, %c0_i32_0 : i32, i32
  }
  func.func @transform_3(%arg0: i32) -> (i32, i32, i32, i32) {
    %c0_i32 = arith.constant 0 : i32
    %c0_i32_0 = arith.constant 0 : i32
    %c0_i32_1 = arith.constant 0 : i32
    %c0_i32_2 = arith.constant 0 : i32
    return %arg0, %c0_i32, %c0_i32_0, %c0_i32_1 : i32, i32, i32, i32
  }
  func.func @transform_4(%arg0: i32) -> (i32, i32, i32) {
    %c0_i32 = arith.constant 0 : i32
    %c0_i32_0 = arith.constant 0 : i32
    %c0_i32_1 = arith.constant 0 : i32
    return %arg0, %c0_i32, %c0_i32_0 : i32, i32, i32
  }
}

module attributes {stable_mosaic.version = 11 : i64} {
  func.func @_stage2_kernel(%arg0: i32, %arg1: memref<1x8x8x4xbf16, #tpu.memory_space<vmem>>, %arg2: memref<1x4xf32, #tpu.memory_space<vmem>>, %arg3: memref<1x4xf32, #tpu.memory_space<vmem>>, %arg4: memref<9x4xf32, #tpu.memory_space<vmem>>, %arg5: memref<4x8xf32, #tpu.memory_space<vmem>>, %arg6: memref<1x8x8x8xbf16, #tpu.memory_space<vmem>>, %arg7: memref<1x2x8xf32, #tpu.memory_space<vmem>>, %arg8: memref<10x10x4xf32, #tpu.memory_space<vmem>>) attributes {dimension_semantics = [#tpu.dimension_semantics<parallel>], iteration_bounds = array<i64: 2>, scalar_prefetch = 0 : i64, scratch_operands = 1 : i64, tpu.core_type = #tpu.core_type<tc>, window_params = [{transform_indices = @transform_0, window_bounds = array<i64: 1, 8, 8, 4>}, {pipeline_mode = #tpu.pipeline_mode<synchronous>, transform_indices = @transform_1, window_bounds = array<i64: 1, 4>}, {pipeline_mode = #tpu.pipeline_mode<synchronous>, transform_indices = @transform_2, window_bounds = array<i64: 1, 4>}, {pipeline_mode = #tpu.pipeline_mode<synchronous>, transform_indices = @transform_3, window_bounds = array<i64: 9, 4>}, {pipeline_mode = #tpu.pipeline_mode<synchronous>, transform_indices = @transform_4, window_bounds = array<i64: 4, 8>}, {transform_indices = @transform_5, window_bounds = array<i64: 1, 8, 8, 8>}, {transform_indices = @transform_6, window_bounds = array<i64: 1, 2, 8>}]} {
    %c0 = arith.constant 0 : index
    %c0_0 = arith.constant 0 : index
    %c0_1 = arith.constant 0 : index
    %c0_2 = arith.constant 0 : index
    %0 = vector.load %arg1[%c0, %c0_0, %c0_1, %c0_2] : memref<1x8x8x4xbf16, #tpu.memory_space<vmem>>, vector<1x8x8x4xbf16>
    %1 = vector.shape_cast %0 : vector<1x8x8x4xbf16> to vector<8x8x4xbf16>
    %2 = arith.extf %1 : vector<8x8x4xbf16> to vector<8x8x4xf32>
    %c0_3 = arith.constant 0 : index
    %c0_4 = arith.constant 0 : index
    %3 = vector.load %arg2[%c0_3, %c0_4] : memref<1x4xf32, #tpu.memory_space<vmem>>, vector<1x4xf32>
    %4 = vector.shape_cast %3 : vector<1x4xf32> to vector<4xf32>
    %5 = vector.shape_cast %4 : vector<4xf32> to vector<1x1x4xf32>
    %6 = vector.broadcast %5 : vector<1x1x4xf32> to vector<8x8x4xf32>
    %7 = arith.mulf %2, %6 : vector<8x8x4xf32>
    %c0_5 = arith.constant 0 : index
    %c0_6 = arith.constant 0 : index
    %8 = vector.load %arg3[%c0_5, %c0_6] : memref<1x4xf32, #tpu.memory_space<vmem>>, vector<1x4xf32>
    %9 = vector.shape_cast %8 : vector<1x4xf32> to vector<4xf32>
    %10 = vector.shape_cast %9 : vector<4xf32> to vector<1x1x4xf32>
    %11 = vector.broadcast %10 : vector<1x1x4xf32> to vector<8x8x4xf32>
    %12 = arith.addf %7, %11 : vector<8x8x4xf32>
    %cst = arith.constant 0.000000e+00 : f32
    %13 = vector.broadcast %cst : f32 to vector<8x8x4xf32>
    %14 = arith.maximumf %12, %13 : vector<8x8x4xf32>
    %cst_7 = arith.constant 0.000000e+00 : f32
    %15 = vector.broadcast %cst_7 : f32 to vector<10x10x4xf32>
    %c0_8 = arith.constant 0 : index
    %c0_9 = arith.constant 0 : index
    %c0_10 = arith.constant 0 : index
    %16 = vector.load %arg8[%c0_8, %c0_9, %c0_10] : memref<10x10x4xf32, #tpu.memory_space<vmem>>, vector<10x10x4xf32>
    tpu.vector_store %arg8[%c0_8, %c0_9, %c0_10], %15 {strides = array<i32>} : memref<10x10x4xf32, #tpu.memory_space<vmem>>, vector<10x10x4xf32>,
    %c1 = arith.constant 1 : index
    %c1_11 = arith.constant 1 : index
    %c0_12 = arith.constant 0 : index
    %17 = vector.load %arg8[%c1, %c1_11, %c0_12] : memref<10x10x4xf32, #tpu.memory_space<vmem>>, vector<8x8x4xf32>
    tpu.vector_store %arg8[%c1, %c1_11, %c0_12], %14 {strides = array<i32>} : memref<10x10x4xf32, #tpu.memory_space<vmem>>, vector<8x8x4xf32>,
    %cst_13 = arith.constant 0.000000e+00 : f32
    %18 = vector.broadcast %cst_13 : f32 to vector<8x8x4xf32>
    %c0_14 = arith.constant 0 : index
    %c0_15 = arith.constant 0 : index
    %c0_16 = arith.constant 0 : index
    %19 = vector.load %arg8[%c0_14, %c0_15, %c0_16] : memref<10x10x4xf32, #tpu.memory_space<vmem>>, vector<8x8x4xf32>
    %c0_17 = arith.constant 0 : index
    %c0_18 = arith.constant 0 : index
    %20 = vector.load %arg4[%c0_17, %c0_18] : memref<9x4xf32, #tpu.memory_space<vmem>>, vector<1x4xf32>
    %21 = vector.shape_cast %20 : vector<1x4xf32> to vector<4xf32>
    %22 = vector.shape_cast %21 : vector<4xf32> to vector<1x1x4xf32>
    %23 = vector.broadcast %22 : vector<1x1x4xf32> to vector<8x8x4xf32>
    %24 = arith.mulf %19, %23 : vector<8x8x4xf32>
    %25 = arith.addf %18, %24 : vector<8x8x4xf32>
    %c0_19 = arith.constant 0 : index
    %c1_20 = arith.constant 1 : index
    %c0_21 = arith.constant 0 : index
    %26 = vector.load %arg8[%c0_19, %c1_20, %c0_21] : memref<10x10x4xf32, #tpu.memory_space<vmem>>, vector<8x8x4xf32>
    %c1_22 = arith.constant 1 : index
    %c0_23 = arith.constant 0 : index
    %27 = vector.load %arg4[%c1_22, %c0_23] : memref<9x4xf32, #tpu.memory_space<vmem>>, vector<1x4xf32>
    %28 = vector.shape_cast %27 : vector<1x4xf32> to vector<4xf32>
    %29 = vector.shape_cast %28 : vector<4xf32> to vector<1x1x4xf32>
    %30 = vector.broadcast %29 : vector<1x1x4xf32> to vector<8x8x4xf32>
    %31 = arith.mulf %26, %30 : vector<8x8x4xf32>
    %32 = arith.addf %25, %31 : vector<8x8x4xf32>
    %c0_24 = arith.constant 0 : index
    %c2 = arith.constant 2 : index
    %c0_25 = arith.constant 0 : index
    %33 = vector.load %arg8[%c0_24, %c2, %c0_25] : memref<10x10x4xf32, #tpu.memory_space<vmem>>, vector<8x8x4xf32>
    %c2_26 = arith.constant 2 : index
    %c0_27 = arith.constant 0 : index
    %34 = vector.load %arg4[%c2_26, %c0_27] : memref<9x4xf32, #tpu.memory_space<vmem>>, vector<1x4xf32>
    %35 = vector.shape_cast %34 : vector<1x4xf32> to vector<4xf32>
    %36 = vector.shape_cast %35 : vector<4xf32> to vector<1x1x4xf32>
    %37 = vector.broadcast %36 : vector<1x1x4xf32> to vector<8x8x4xf32>
    %38 = arith.mulf %33, %37 : vector<8x8x4xf32>
    %39 = arith.addf %32, %38 : vector<8x8x4xf32>
    %c1_28 = arith.constant 1 : index
    %c0_29 = arith.constant 0 : index
    %c0_30 = arith.constant 0 : index
    %40 = vector.load %arg8[%c1_28, %c0_29, %c0_30] : memref<10x10x4xf32, #tpu.memory_space<vmem>>, vector<8x8x4xf32>
    %c3 = arith.constant 3 : index
    %c0_31 = arith.constant 0 : index
    %41 = vector.load %arg4[%c3, %c0_31] : memref<9x4xf32, #tpu.memory_space<vmem>>, vector<1x4xf32>
    %42 = vector.shape_cast %41 : vector<1x4xf32> to vector<4xf32>
    %43 = vector.shape_cast %42 : vector<4xf32> to vector<1x1x4xf32>
    %44 = vector.broadcast %43 : vector<1x1x4xf32> to vector<8x8x4xf32>
    %45 = arith.mulf %40, %44 : vector<8x8x4xf32>
    %46 = arith.addf %39, %45 : vector<8x8x4xf32>
    %c1_32 = arith.constant 1 : index
    %c1_33 = arith.constant 1 : index
    %c0_34 = arith.constant 0 : index
    %47 = vector.load %arg8[%c1_32, %c1_33, %c0_34] : memref<10x10x4xf32, #tpu.memory_space<vmem>>, vector<8x8x4xf32>
    %c4 = arith.constant 4 : index
    %c0_35 = arith.constant 0 : index
    %48 = vector.load %arg4[%c4, %c0_35] : memref<9x4xf32, #tpu.memory_space<vmem>>, vector<1x4xf32>
    %49 = vector.shape_cast %48 : vector<1x4xf32> to vector<4xf32>
    %50 = vector.shape_cast %49 : vector<4xf32> to vector<1x1x4xf32>
    %51 = vector.broadcast %50 : vector<1x1x4xf32> to vector<8x8x4xf32>
    %52 = arith.mulf %47, %51 : vector<8x8x4xf32>
    %53 = arith.addf %46, %52 : vector<8x8x4xf32>
    %c1_36 = arith.constant 1 : index
    %c2_37 = arith.constant 2 : index
    %c0_38 = arith.constant 0 : index
    %54 = vector.load %arg8[%c1_36, %c2_37, %c0_38] : memref<10x10x4xf32, #tpu.memory_space<vmem>>, vector<8x8x4xf32>
    %c5 = arith.constant 5 : index
    %c0_39 = arith.constant 0 : index
    %55 = vector.load %arg4[%c5, %c0_39] : memref<9x4xf32, #tpu.memory_space<vmem>>, vector<1x4xf32>
    %56 = vector.shape_cast %55 : vector<1x4xf32> to vector<4xf32>
    %57 = vector.shape_cast %56 : vector<4xf32> to vector<1x1x4xf32>
    %58 = vector.broadcast %57 : vector<1x1x4xf32> to vector<8x8x4xf32>
    %59 = arith.mulf %54, %58 : vector<8x8x4xf32>
    %60 = arith.addf %53, %59 : vector<8x8x4xf32>
    %c2_40 = arith.constant 2 : index
    %c0_41 = arith.constant 0 : index
    %c0_42 = arith.constant 0 : index
    %61 = vector.load %arg8[%c2_40, %c0_41, %c0_42] : memref<10x10x4xf32, #tpu.memory_space<vmem>>, vector<8x8x4xf32>
    %c6 = arith.constant 6 : index
    %c0_43 = arith.constant 0 : index
    %62 = vector.load %arg4[%c6, %c0_43] : memref<9x4xf32, #tpu.memory_space<vmem>>, vector<1x4xf32>
    %63 = vector.shape_cast %62 : vector<1x4xf32> to vector<4xf32>
    %64 = vector.shape_cast %63 : vector<4xf32> to vector<1x1x4xf32>
    %65 = vector.broadcast %64 : vector<1x1x4xf32> to vector<8x8x4xf32>
    %66 = arith.mulf %61, %65 : vector<8x8x4xf32>
    %67 = arith.addf %60, %66 : vector<8x8x4xf32>
    %c2_44 = arith.constant 2 : index
    %c1_45 = arith.constant 1 : index
    %c0_46 = arith.constant 0 : index
    %68 = vector.load %arg8[%c2_44, %c1_45, %c0_46] : memref<10x10x4xf32, #tpu.memory_space<vmem>>, vector<8x8x4xf32>
    %c7 = arith.constant 7 : index
    %c0_47 = arith.constant 0 : index
    %69 = vector.load %arg4[%c7, %c0_47] : memref<9x4xf32, #tpu.memory_space<vmem>>, vector<1x4xf32>
    %70 = vector.shape_cast %69 : vector<1x4xf32> to vector<4xf32>
    %71 = vector.shape_cast %70 : vector<4xf32> to vector<1x1x4xf32>
    %72 = vector.broadcast %71 : vector<1x1x4xf32> to vector<8x8x4xf32>
    %73 = arith.mulf %68, %72 : vector<8x8x4xf32>
    %74 = arith.addf %67, %73 : vector<8x8x4xf32>
    %c2_48 = arith.constant 2 : index
    %c2_49 = arith.constant 2 : index
    %c0_50 = arith.constant 0 : index
    %75 = vector.load %arg8[%c2_48, %c2_49, %c0_50] : memref<10x10x4xf32, #tpu.memory_space<vmem>>, vector<8x8x4xf32>
    %c8 = arith.constant 8 : index
    %c0_51 = arith.constant 0 : index
    %76 = vector.load %arg4[%c8, %c0_51] : memref<9x4xf32, #tpu.memory_space<vmem>>, vector<1x4xf32>
    %77 = vector.shape_cast %76 : vector<1x4xf32> to vector<4xf32>
    %78 = vector.shape_cast %77 : vector<4xf32> to vector<1x1x4xf32>
    %79 = vector.broadcast %78 : vector<1x1x4xf32> to vector<8x8x4xf32>
    %80 = arith.mulf %75, %79 : vector<8x8x4xf32>
    %81 = arith.addf %74, %80 : vector<8x8x4xf32>
    %82 = vector.shape_cast %81 : vector<8x8x4xf32> to vector<64x4xf32>
    %83 = arith.truncf %82 : vector<64x4xf32> to vector<64x4xbf16>
    %c0_52 = arith.constant 0 : index
    %c0_53 = arith.constant 0 : index
    %84 = vector.load %arg5[%c0_52, %c0_53] : memref<4x8xf32, #tpu.memory_space<vmem>>, vector<4x8xf32>
    %85 = arith.truncf %84 : vector<4x8xf32> to vector<4x8xbf16>
    %cst_54 = arith.constant dense<0.000000e+00> : vector<64x8xf32>
    %86 = tpu.matmul %83, %85, %cst_54 {dimension_numbers = #tpu.dot_dimension_numbers<[1], [0], [0], [1], [0, 0, 1, 1], [], []>} : vector<64x4xbf16>, vector<4x8xbf16>, vector<64x8xf32> -> vector<64x8xf32>
    %cst_55 = arith.constant dense<0.000000e+00> : vector<8xf32>
    %87 = vector.multi_reduction <add>, %86, %cst_55 [0] : vector<64x8xf32> to vector<8xf32>
    %88 = vector.shape_cast %87 : vector<8xf32> to vector<1x8xf32>
    %c0_56 = arith.constant 0 : index
    %c0_57 = arith.constant 0 : index
    %c0_58 = arith.constant 0 : index
    %89 = vector.load %arg7[%c0_56, %c0_57, %c0_58] : memref<1x2x8xf32, #tpu.memory_space<vmem>>, vector<1x1x8xf32>
    %90 = vector.shape_cast %89 : vector<1x1x8xf32> to vector<1x8xf32>
    %91 = vector.shape_cast %88 : vector<1x8xf32> to vector<1x1x8xf32>
    tpu.vector_store %arg7[%c0_56, %c0_57, %c0_58], %91 {strides = array<i32>} : memref<1x2x8xf32, #tpu.memory_space<vmem>>, vector<1x1x8xf32>,
    %92 = arith.mulf %86, %86 : vector<64x8xf32>
    %cst_59 = arith.constant dense<0.000000e+00> : vector<8xf32>
    %93 = vector.multi_reduction <add>, %92, %cst_59 [0] : vector<64x8xf32> to vector<8xf32>
    %94 = vector.shape_cast %93 : vector<8xf32> to vector<1x8xf32>
    %c0_60 = arith.constant 0 : index
    %c1_61 = arith.constant 1 : index
    %c0_62 = arith.constant 0 : index
    %95 = vector.load %arg7[%c0_60, %c1_61, %c0_62] : memref<1x2x8xf32, #tpu.memory_space<vmem>>, vector<1x1x8xf32>
    %96 = vector.shape_cast %95 : vector<1x1x8xf32> to vector<1x8xf32>
    %97 = vector.shape_cast %94 : vector<1x8xf32> to vector<1x1x8xf32>
    tpu.vector_store %arg7[%c0_60, %c1_61, %c0_62], %97 {strides = array<i32>} : memref<1x2x8xf32, #tpu.memory_space<vmem>>, vector<1x1x8xf32>,
    %98 = vector.shape_cast %86 : vector<64x8xf32> to vector<8x8x8xf32>
    %99 = arith.truncf %98 : vector<8x8x8xf32> to vector<8x8x8xbf16>
    %c0_63 = arith.constant 0 : index
    %c0_64 = arith.constant 0 : index
    %c0_65 = arith.constant 0 : index
    %c0_66 = arith.constant 0 : index
    %100 = vector.load %arg6[%c0_63, %c0_64, %c0_65, %c0_66] : memref<1x8x8x8xbf16, #tpu.memory_space<vmem>>, vector<1x8x8x8xbf16>
    %101 = vector.shape_cast %100 : vector<1x8x8x8xbf16> to vector<8x8x8xbf16>
    %102 = vector.shape_cast %99 : vector<8x8x8xbf16> to vector<1x8x8x8xbf16>
    tpu.vector_store %arg6[%c0_63, %c0_64, %c0_65, %c0_66], %102 {strides = array<i32>} : memref<1x8x8x8xbf16, #tpu.memory_space<vmem>>, vector<1x8x8x8xbf16>,
    return
  }
  func.func @transform_0(%arg0: i32) -> (i32, i32, i32, i32) {
    %c0_i32 = arith.constant 0 : i32
    %c0_i32_0 = arith.constant 0 : i32
    %c0_i32_1 = arith.constant 0 : i32
    %c0_i32_2 = arith.constant 0 : i32
    return %arg0, %c0_i32, %c0_i32_0, %c0_i32_1 : i32, i32, i32, i32
  }
  func.func @transform_1(%arg0: i32) -> (i32, i32) {
    %c0_i32 = arith.constant 0 : i32
    %c0_i32_0 = arith.constant 0 : i32
    %c0_i32_1 = arith.constant 0 : i32
    return %c0_i32, %c0_i32_0 : i32, i32
  }
  func.func @transform_2(%arg0: i32) -> (i32, i32) {
    %c0_i32 = arith.constant 0 : i32
    %c0_i32_0 = arith.constant 0 : i32
    %c0_i32_1 = arith.constant 0 : i32
    return %c0_i32, %c0_i32_0 : i32, i32
  }
  func.func @transform_3(%arg0: i32) -> (i32, i32) {
    %c0_i32 = arith.constant 0 : i32
    %c0_i32_0 = arith.constant 0 : i32
    %c0_i32_1 = arith.constant 0 : i32
    return %c0_i32, %c0_i32_0 : i32, i32
  }
  func.func @transform_4(%arg0: i32) -> (i32, i32) {
    %c0_i32 = arith.constant 0 : i32
    %c0_i32_0 = arith.constant 0 : i32
    %c0_i32_1 = arith.constant 0 : i32
    return %c0_i32, %c0_i32_0 : i32, i32
  }
  func.func @transform_5(%arg0: i32) -> (i32, i32, i32, i32) {
    %c0_i32 = arith.constant 0 : i32
    %c0_i32_0 = arith.constant 0 : i32
    %c0_i32_1 = arith.constant 0 : i32
    %c0_i32_2 = arith.constant 0 : i32
    return %arg0, %c0_i32, %c0_i32_0, %c0_i32_1 : i32, i32, i32, i32
  }
  func.func @transform_6(%arg0: i32) -> (i32, i32, i32) {
    %c0_i32 = arith.constant 0 : i32
    %c0_i32_0 = arith.constant 0 : i32
    %c0_i32_1 = arith.constant 0 : i32
    return %arg0, %c0_i32, %c0_i32_0 : i32, i32, i32
  }
}

module attributes {stable_mosaic.version = 11 : i64} {
  func.func @_bn_relu_kernel(%arg0: i32, %arg1: memref<1x8x8x8xbf16, #tpu.memory_space<vmem>>, %arg2: memref<1x8xf32, #tpu.memory_space<vmem>>, %arg3: memref<1x8xf32, #tpu.memory_space<vmem>>, %arg4: memref<1x8x8x8xf32, #tpu.memory_space<vmem>>) attributes {dimension_semantics = [#tpu.dimension_semantics<parallel>], iteration_bounds = array<i64: 2>, scalar_prefetch = 0 : i64, scratch_operands = 0 : i64, tpu.core_type = #tpu.core_type<tc>, window_params = [{transform_indices = @transform_0, window_bounds = array<i64: 1, 8, 8, 8>}, {pipeline_mode = #tpu.pipeline_mode<synchronous>, transform_indices = @transform_1, window_bounds = array<i64: 1, 8>}, {pipeline_mode = #tpu.pipeline_mode<synchronous>, transform_indices = @transform_2, window_bounds = array<i64: 1, 8>}, {transform_indices = @transform_3, window_bounds = array<i64: 1, 8, 8, 8>}]} {
    %c0 = arith.constant 0 : index
    %c0_0 = arith.constant 0 : index
    %c0_1 = arith.constant 0 : index
    %c0_2 = arith.constant 0 : index
    %0 = vector.load %arg1[%c0, %c0_0, %c0_1, %c0_2] : memref<1x8x8x8xbf16, #tpu.memory_space<vmem>>, vector<1x8x8x8xbf16>
    %1 = vector.shape_cast %0 : vector<1x8x8x8xbf16> to vector<8x8x8xbf16>
    %2 = arith.extf %1 : vector<8x8x8xbf16> to vector<8x8x8xf32>
    %c0_3 = arith.constant 0 : index
    %c0_4 = arith.constant 0 : index
    %3 = vector.load %arg2[%c0_3, %c0_4] : memref<1x8xf32, #tpu.memory_space<vmem>>, vector<1x8xf32>
    %4 = vector.shape_cast %3 : vector<1x8xf32> to vector<8xf32>
    %5 = vector.shape_cast %4 : vector<8xf32> to vector<1x1x8xf32>
    %6 = vector.broadcast %5 : vector<1x1x8xf32> to vector<8x8x8xf32>
    %7 = arith.mulf %2, %6 : vector<8x8x8xf32>
    %c0_5 = arith.constant 0 : index
    %c0_6 = arith.constant 0 : index
    %8 = vector.load %arg3[%c0_5, %c0_6] : memref<1x8xf32, #tpu.memory_space<vmem>>, vector<1x8xf32>
    %9 = vector.shape_cast %8 : vector<1x8xf32> to vector<8xf32>
    %10 = vector.shape_cast %9 : vector<8xf32> to vector<1x1x8xf32>
    %11 = vector.broadcast %10 : vector<1x1x8xf32> to vector<8x8x8xf32>
    %12 = arith.addf %7, %11 : vector<8x8x8xf32>
    %cst = arith.constant 0.000000e+00 : f32
    %13 = vector.broadcast %cst : f32 to vector<8x8x8xf32>
    %14 = arith.maximumf %12, %13 : vector<8x8x8xf32>
    %c0_7 = arith.constant 0 : index
    %c0_8 = arith.constant 0 : index
    %c0_9 = arith.constant 0 : index
    %c0_10 = arith.constant 0 : index
    %15 = vector.load %arg4[%c0_7, %c0_8, %c0_9, %c0_10] : memref<1x8x8x8xf32, #tpu.memory_space<vmem>>, vector<1x8x8x8xf32>
    %16 = vector.shape_cast %15 : vector<1x8x8x8xf32> to vector<8x8x8xf32>
    %17 = vector.shape_cast %14 : vector<8x8x8xf32> to vector<1x8x8x8xf32>
    tpu.vector_store %arg4[%c0_7, %c0_8, %c0_9, %c0_10], %17 {strides = array<i32>} : memref<1x8x8x8xf32, #tpu.memory_space<vmem>>, vector<1x8x8x8xf32>,
    return
  }
  func.func @transform_0(%arg0: i32) -> (i32, i32, i32, i32) {
    %c0_i32 = arith.constant 0 : i32
    %c0_i32_0 = arith.constant 0 : i32
    %c0_i32_1 = arith.constant 0 : i32
    %c0_i32_2 = arith.constant 0 : i32
    return %arg0, %c0_i32, %c0_i32_0, %c0_i32_1 : i32, i32, i32, i32
  }
  func.func @transform_1(%arg0: i32) -> (i32, i32) {
    %c0_i32 = arith.constant 0 : i32
    %c0_i32_0 = arith.constant 0 : i32
    %c0_i32_1 = arith.constant 0 : i32
    return %c0_i32, %c0_i32_0 : i32, i32
  }
  func.func @transform_2(%arg0: i32) -> (i32, i32) {
    %c0_i32 = arith.constant 0 : i32
    %c0_i32_0 = arith.constant 0 : i32
    %c0_i32_1 = arith.constant 0 : i32
    return %c0_i32, %c0_i32_0 : i32, i32
  }
  func.func @transform_3(%arg0: i32) -> (i32, i32, i32, i32) {
    %c0_i32 = arith.constant 0 : i32
    %c0_i32_0 = arith.constant 0 : i32
    %c0_i32_1 = arith.constant 0 : i32
    %c0_i32_2 = arith.constant 0 : i32
    return %arg0, %c0_i32, %c0_i32_0, %c0_i32_1 : i32, i32, i32, i32
  }
}

</mosaic_0001>

<llo_original>
// kernel: sepconv_forward.5
$region0: #{sepconv_forward.5}
  #allocation0 [shape = 'u32[]', space=smem, size = 0x4, offset = 0x4, fixed_abs, tag = 'smem constant byte address 0x4 - core index']
  #allocation1 [shape = 'u32[72,128]{1,0:T(1,128)}', space=vmem, size = 0x9000, scoped, tag = 'internal scratch']
  %s0 = inlined_call_operand.vmem [shape: bf16[2,8,8,8], index: 0, kind: input, shape index: {}]
  %s1 = inlined_call_operand.vmem [shape: f32[1,8], index: 1, kind: input, shape index: {}]
  %s2 = inlined_call_operand.vmem [shape: f32[1,8], index: 2, kind: input, shape index: {}]
  %s3 = inlined_call_operand.vmem [shape: f32[2,8,8,8], index: 3, kind: output, shape index: {}]
  %s4 = sld [smem:[#allocation0]]
  $region45: #{sepconv_forward.5} parent=0
    _
  %s6 = ssub.s32 1, %s4
  %s7 = scalar_select 0, %s6, %s4
  loop: start=0, step=1, limit=4
  $region2: #{sepconv_forward.5} parent=0 // loop_pre_header
    _
  $region3: #{sepconv_forward.5} parent=0 // loop_header
    %s9 = sphi 0, %s13
    %p10 = scmp.ge.s32.totalorder %s9, 4
    %s19 = sphi 0, %s21
    %s22 = sphi 0, %s19
    %s23 = sphi 0, %s22
    %s39 = sphi 0, %s23
    %s43 = sphi 0, %s43
    %s45 = sphi 0, %s43
    %s46 = sphi 0, %s45
    %s60 = sphi 0, %s46
    %s64 = sphi 0, %s64
    %s66 = sphi 0, %s64
    %s67 = sphi 0, %s66
    %s81 = sphi 0, %s67
    %s87 = sphi 0, %s89
    %s90 = sphi 0, %s87
    %s91 = sphi 0, %s90
    %s107 = sphi 0, %s91
  $region4: #{sepconv_forward.5} parent=0 // loop_header_branch
    %12 = sbr.rel (%p10) target = $region8
  $region5: #{sepconv_forward.5} parent=0 // loop_body
    %s14 = ssub.s32 %s9, 1
    %s15 = ssub.s32 %s9, 2
    %s16 = sadd.s32 %s9, 1
    %s17 = ssub.s32 %s9, %s16
    %p18 = scmp.eq.s32.totalorder %s17, 0
    %s20 = sadd.s32 %s19, 1
    %s21 = scalar_select %p18, %s19, %s20
    %p24 = pneg %p18
    %p25 = scmp.eq.s32.totalorder %s9, 1
    %p26 = por %p24, %p25
    %p27 = scmp.ne.s32.totalorder %s19, %s22
    %p28 = scmp.eq.s32.totalorder %s9, 0
    %p29 = por %p27, %p28
    %p30 = scmp.ne.s32.totalorder %s19, %s22
    %p31 = scmp.eq.s32.totalorder %s14, 1
    %p32 = por %p30, %p31
    %p33 = scmp.ne.s32.totalorder %s22, %s23
    %p34 = scmp.eq.s32.totalorder %s14, 0
    %p35 = por %p33, %p34
    %p36 = scmp.ne.s32.totalorder %s22, %s23
    %p37 = scmp.eq.s32.totalorder %s15, 1
    %p38 = por %p36, %p37
    %p40 = scmp.ne.s32.totalorder %s23, %s39
    %p41 = scmp.eq.s32.totalorder %s15, 0
    %p42 = por %p40, %p41
    %s44 = sadd.s32 %s43, 1
    %p47 = scmp.eq.s32.totalorder %s9, 1
    %p48 = scmp.ne.s32.totalorder %s43, %s45
    %p49 = scmp.eq.s32.totalorder %s9, 0
    %p50 = por %p48, %p49
    %p51 = scmp.ne.s32.totalorder %s43, %s45
    %p52 = scmp.eq.s32.totalorder %s14, 1
    %p53 = por %p51, %p52
    %p54 = scmp.ne.s32.totalorder %s45, %s46
    %p55 = scmp.eq.s32.totalorder %s14, 0
    %p56 = por %p54, %p55
    %p57 = scmp.ne.s32.totalorder %s45, %s46
    %p58 = scmp.eq.s32.totalorder %s15, 1
    %p59 = por %p57, %p58
    %p61 = scmp.ne.s32.totalorder %s46, %s60
    %p62 = scmp.eq.s32.totalorder %s15, 0
    %p63 = por %p61, %p62
    %s65 = sadd.s32 %s64, 1
    %p68 = scmp.eq.s32.totalorder %s9, 1
    %p69 = scmp.ne.s32.totalorder %s64, %s66
    %p70 = scmp.eq.s32.totalorder %s9, 0
    %p71 = por %p69, %p70
    %p72 = scmp.ne.s32.totalorder %s64, %s66
    %p73 = scmp.eq.s32.totalorder %s14, 1
    %p74 = por %p72, %p73
    %p75 = scmp.ne.s32.totalorder %s66, %s67
    %p76 = scmp.eq.s32.totalorder %s14, 0
    %p77 = por %p75, %p76
    %p78 = scmp.ne.s32.totalorder %s66, %s67
    %p79 = scmp.eq.s32.totalorder %s15, 1
    %p80 = por %p78, %p79
    %p82 = scmp.ne.s32.totalorder %s67, %s81
    %p83 = scmp.eq.s32.totalorder %s15, 0
    %p84 = por %p82, %p83
    %s85 = ssub.s32 %s9, %s16
    %p86 = scmp.eq.s32.totalorder %s85, 0
    %s88 = sadd.s32 %s87, 1
    %s89 = scalar_select %p86, %s87, %s88
    %p92 = pneg %p86
    %p93 = scmp.eq.s32.totalorder %s9, 1
    %p94 = por %p92, %p93
    %p95 = scmp.ne.s32.totalorder %s87, %s90
    %p96 = scmp.eq.s32.totalorder %s9, 0
    %p97 = por %p95, %p96
    %p98 = scmp.ne.s32.totalorder %s87, %s90
    %p99 = scmp.eq.s32.totalorder %s14, 1
    %p100 = por %p98, %p99
    %p101 = scmp.ne.s32.totalorder %s90, %s91
    %p102 = scmp.eq.s32.totalorder %s14, 0
    %p103 = por %p101, %p102
    %p104 = scmp.ne.s32.totalorder %s90, %s91
    %p105 = scmp.eq.s32.totalorder %s15, 1
    %p106 = por %p104, %p105
    %p108 = scmp.ne.s32.totalorder %s91, %s107
    %p109 = scmp.eq.s32.totalorder %s15, 0
    %p110 = por %p108, %p109
    %p111 = scmp.le.s32.totalorder 1, %s9
    %p112 = scmp.lt.s32.totalorder %s9, 3
    %p113 = pnand %p111, %p112
    %p114 = pneg %p113
    // Predicated region
    $region9: #{sepconv_forward.5} parent=5 // pred_check
      _
    $region10: #{sepconv_forward.5} parent=5 // pred_check_branch
      %116 = sbr.rel (%p113) target = $region12
    $region11: #{sepconv_forward.5} parent=5 // pred_region
      %s117 = ssub.s32 %s9, 1
      // Predicated region
      $region13: #{sepconv_forward.5} parent=11 // pred_check
        %p118 = pneg %p56
      $region14: #{sepconv_forward.5} parent=11 // pred_check_branch
        %120 = sbr.rel (%p118) target = $region16
      $region15: #{sepconv_forward.5} parent=11 // pred_region
        _
      $region16: #{sepconv_forward.5} parent=11 // pred_fallthru
        _
      // Predicated region
      $region17: #{sepconv_forward.5} parent=11 // pred_check
        %p121 = pneg %p77
      $region18: #{sepconv_forward.5} parent=11 // pred_check_branch
        %123 = sbr.rel (%p121) target = $region20
      $region19: #{sepconv_forward.5} parent=11 // pred_region
        _
      $region20: #{sepconv_forward.5} parent=11 // pred_fallthru
        _
    $region12: #{sepconv_forward.5} parent=5 // pred_fallthru
      _
    %p124 = scmp.lt.s32.totalorder %s9, 2
    // Predicated region
    $region21: #{sepconv_forward.5} parent=5 // pred_check
      %p125 = pneg %p124
    $region22: #{sepconv_forward.5} parent=5 // pred_check_branch
      %127 = sbr.rel (%p125) target = $region24
    $region23: #{sepconv_forward.5} parent=5 // pred_region
      // Predicated region
      $region25: #{sepconv_forward.5} parent=23 // pred_check
        %p128 = pneg %p29
      $region26: #{sepconv_forward.5} parent=23 // pred_check_branch
        %130 = sbr.rel (%p128) target = $region28
      $region27: #{sepconv_forward.5} parent=23 // pred_region
        %p131 = scmp.lt.s32.totalorder %s9, 1
        %s132 = scalar_select %p131, %s9, 1
        %s133 = smul.addr %s132, 8
        %s134 = smul.addr %s133, 4
        %s135 = scalar_lea.vmem %s0, %s134
      $region28: #{sepconv_forward.5} parent=23 // pred_fallthru
        _
    $region24: #{sepconv_forward.5} parent=5 // pred_fallthru
      _
    %p136 = scmp.le.s32.totalorder 1, %s9
    %p137 = scmp.lt.s32.totalorder %s9, 3
    %p138 = pnand %p136, %p137
    %p139 = pneg %p138
    // Predicated region
    $region29: #{sepconv_forward.5} parent=5 // pred_check
      _
    $region30: #{sepconv_forward.5} parent=5 // pred_check_branch
      %141 = sbr.rel (%p138) target = $region32
    $region31: #{sepconv_forward.5} parent=5 // pred_region
      %s142 = ssub.s32 %s9, 1
      %p143 = scmp.lt.s32.totalorder %s14, 1
      %s144 = scalar_select %p143, %s14, 1
      %s145 = smul.addr %s144, 8
      %s146 = smul.addr %s145, 4
      %s147 = scalar_lea.vmem %s0, %s146
      %p148 = pneg %p35
      %p149 = pneg %p32
      %p150 = pneg %p56
      %p151 = pneg %p53
      %p152 = pneg %p77
      %p153 = pneg %p74
      %p154 = pneg %p103
      %p155 = pneg %p100
      %p156 = scmp.lt.s32.totalorder %s14, 1
      %s157 = scalar_select %p156, %s14, 1
      %s158 = smul.addr %s157, 8
      %s159 = smul.addr %s158, 8
      %s160 = scalar_lea.vmem %s3, %s159
      %p161 = scmp.lt.s32.totalorder %s14, 1
      %s162 = scalar_select %p161, %s14, 1
      %s163 = smul.addr %s162, 8
      %s164 = smul.addr %s163, 4
      %s165 = scalar_lea.vmem %s0, %s164
      %p166 = scmp.lt.s32.totalorder %s14, 1
      %s167 = scalar_select %p166, %s14, 1
      %s168 = smul.addr %s167, 8
      %s169 = smul.addr %s168, 8
      %s170 = scalar_lea.vmem %s3, %s169
      %v171 = vld [vmem:[%s165] sm:$0xf]
      %v172 = vld [vmem:[%s165 + $0x4] sm:$0xf]
      %v173 = vld [vmem:[%s165 + $0x8] sm:$0xf]
      %v174 = vld [vmem:[%s165 + $0xc] sm:$0xf]
      %v175 = vld [vmem:[%s165 + $0x10] sm:$0xf]
      %v176 = vld [vmem:[%s165 + $0x14] sm:$0xf]
      %v177 = vld [vmem:[%s165 + $0x18] sm:$0xf]
      %v178 = vld [vmem:[%s165 + $0x1c] sm:$0xf]
      %v179 = vunpack.c.l.bf16 %v171
      %v180 = vunpack.c.l.bf16 %v172
      %v181 = vunpack.c.l.bf16 %v173
      %v182 = vunpack.c.l.bf16 %v174
      %v183 = vunpack.c.l.bf16 %v175
      %v184 = vunpack.c.l.bf16 %v176
      %v185 = vunpack.c.l.bf16 %v177
      %v186 = vunpack.c.l.bf16 %v178
      %v187 = vld [vmem:[%s1] sm:$0x1]
      %v189 = vperm.slane %v187, 0
      %v191 = vmul.f32 %v179, %v189
      %v192 = vmul.f32 %v180, %v189
      %v193 = vmul.f32 %v181, %v189
      %v194 = vmul.f32 %v182, %v189
      %v195 = vmul.f32 %v183, %v189
      %v196 = vmul.f32 %v184, %v189
      %v197 = vmul.f32 %v185, %v189
      %v198 = vmul.f32 %v186, %v189
      %v199 = vld [vmem:[%s2] sm:$0x1]
      %v201 = vperm.slane %v199, 0
      %v203 = vadd.f32 %v191, %v201
      %v204 = vadd.f32 %v192, %v201
      %v205 = vadd.f32 %v193, %v201
      %v206 = vadd.f32 %v194, %v201
      %v207 = vadd.f32 %v195, %v201
      %v208 = vadd.f32 %v196, %v201
      %v209 = vadd.f32 %v197, %v201
      %v210 = vadd.f32 %v198, %v201
      %v211 = vmax.f32 %v203, 0.0
      %v212 = vmax.f32 %v204, 0.0
      %v213 = vmax.f32 %v205, 0.0
      %v214 = vmax.f32 %v206, 0.0
      %v215 = vmax.f32 %v207, 0.0
      %v216 = vmax.f32 %v208, 0.0
      %v217 = vmax.f32 %v209, 0.0
      %v218 = vmax.f32 %v210, 0.0
      %vm219 = vcmask 64512
      %220 = vst.msk [vmem:[%s170] sm:$0xff] %vm219, %v211
      %221 = vst.msk [vmem:[%s170 + $0x8] sm:$0xff] %vm219, %v212
      %222 = vst.msk [vmem:[%s170 + $0x10] sm:$0xff] %vm219, %v213
      %223 = vst.msk [vmem:[%s170 + $0x18] sm:$0xff] %vm219, %v214
      %224 = vst.msk [vmem:[%s170 + $0x20] sm:$0xff] %vm219, %v215
      %225 = vst.msk [vmem:[%s170 + $0x28] sm:$0xff] %vm219, %v216
      %226 = vst.msk [vmem:[%s170 + $0x30] sm:$0xff] %vm219, %v217
      %227 = vst.msk [vmem:[%s170 + $0x38] sm:$0xff] %vm219, %v218
      %p228 = scmp.lt.s32.totalorder %s14, 1
      %s229 = scalar_select %p228, %s14, 1
      %s230 = smul.addr %s229, 8
      %s231 = smul.addr %s230, 8
      %s232 = scalar_lea.vmem %s3, %s231
      // Predicated region
      $region33: #{sepconv_forward.5} parent=31 // pred_check
        %p233 = pneg %p100
      $region34: #{sepconv_forward.5} parent=31 // pred_check_branch
        %235 = sbr.rel (%p233) target = $region36
      $region35: #{sepconv_forward.5} parent=31 // pred_region
        _
      $region36: #{sepconv_forward.5} parent=31 // pred_fallthru
        _
    $region32: #{sepconv_forward.5} parent=5 // pred_fallthru
      _
    %p236 = scmp.le.s32.totalorder 2, %s9
    // Predicated region
    $region37: #{sepconv_forward.5} parent=5 // pred_check
      %p237 = pneg %p236
    $region38: #{sepconv_forward.5} parent=5 // pred_check_branch
      %239 = sbr.rel (%p237) target = $region40
    $region39: #{sepconv_forward.5} parent=5 // pred_region
      %s240 = ssub.s32 %s9, 2
      // Predicated region
      $region41: #{sepconv_forward.5} parent=39 // pred_check
        %p241 = pneg %p106
      $region42: #{sepconv_forward.5} parent=39 // pred_check_branch
        %243 = sbr.rel (%p241) target = $region44
      $region43: #{sepconv_forward.5} parent=39 // pred_region
        %p244 = scmp.lt.s32.totalorder %s15, 1
        %s245 = scalar_select %p244, %s15, 1
        %s246 = smul.addr %s245, 8
        %s247 = smul.addr %s246, 8
        %s248 = scalar_lea.vmem %s3, %s247
      $region44: #{sepconv_forward.5} parent=39 // pred_fallthru
        _
    $region40: #{sepconv_forward.5} parent=5 // pred_fallthru
      _
  $region6: #{sepconv_forward.5} parent=0 // loop_footer
    %s13 = sadd.s32 1, %s9
  $region7: #{sepconv_forward.5} parent=0 // loop_footer_branch
    %8 = sbr.rel target = $region3
  $region8: #{sepconv_forward.5} parent=0 // loop_exit
    _

// kernel: sepconv_forward.3
$region0: #{sepconv_forward.3}
  #allocation0 [shape = 'u32[]', space=smem, size = 0x4, offset = 0x4, fixed_abs, tag = 'smem constant byte address 0x4 - core index']
  #allocation1 [shape = 'u32[72,128]{1,0:T(1,128)}', space=vmem, size = 0x9000, scoped, tag = 'internal scratch']
  #allocation2 [shape = 'f32[9,9,16]{2,1,0:T(8,128)}', space=vmem, size = 0x12000, scoped, tag = 'scratch operand']
  %s0 = inlined_call_operand.vmem [shape: f32[2,8,8,16], index: 0, kind: input, shape index: {}]
  %s1 = inlined_call_operand.vmem [shape: f32[9,4], index: 1, kind: input, shape index: {}]
  %s2 = inlined_call_operand.vmem [shape: f32[4,4], index: 2, kind: input, shape index: {}]
  %s3 = inlined_call_operand.vmem [shape: bf16[2,8,8,4], index: 3, kind: output, shape index: {0}]
  %s4 = inlined_call_operand.vmem [shape: f32[2,2,4], index: 4, kind: output, shape index: {1}]
  %5 = xla_tuple %s3, %s4
  %s6 = sld [smem:[#allocation0]]
  $region53: #{sepconv_forward.3} parent=0
    _
  %s8 = ssub.s32 1, %s6
  %s9 = scalar_select 0, %s8, %s6
  loop: start=0, step=1, limit=4
  $region2: #{sepconv_forward.3} parent=0 // loop_pre_header
    _
  $region3: #{sepconv_forward.3} parent=0 // loop_header
    %s11 = sphi 0, %s15
    %p12 = scmp.ge.s32.totalorder %s11, 4
    %s21 = sphi 0, %s23
    %s24 = sphi 0, %s21
    %s25 = sphi 0, %s24
    %s41 = sphi 0, %s25
    %s45 = sphi 0, %s45
    %s47 = sphi 0, %s45
    %s48 = sphi 0, %s47
    %s62 = sphi 0, %s48
    %s66 = sphi 0, %s66
    %s68 = sphi 0, %s66
    %s69 = sphi 0, %s68
    %s83 = sphi 0, %s69
    %s89 = sphi 0, %s91
    %s92 = sphi 0, %s89
    %s93 = sphi 0, %s92
    %s109 = sphi 0, %s93
    %s115 = sphi 0, %s117
    %s118 = sphi 0, %s115
    %s119 = sphi 0, %s118
    %s135 = sphi 0, %s119
  $region4: #{sepconv_forward.3} parent=0 // loop_header_branch
    %14 = sbr.rel (%p12) target = $region8
  $region5: #{sepconv_forward.3} parent=0 // loop_body
    %s16 = ssub.s32 %s11, 1
    %s17 = ssub.s32 %s11, 2
    %s18 = sadd.s32 %s11, 1
    %s19 = ssub.s32 %s11, %s18
    %p20 = scmp.eq.s32.totalorder %s19, 0
    %s22 = sadd.s32 %s21, 1
    %s23 = scalar_select %p20, %s21, %s22
    %p26 = pneg %p20
    %p27 = scmp.eq.s32.totalorder %s11, 1
    %p28 = por %p26, %p27
    %p29 = scmp.ne.s32.totalorder %s21, %s24
    %p30 = scmp.eq.s32.totalorder %s11, 0
    %p31 = por %p29, %p30
    %p32 = scmp.ne.s32.totalorder %s21, %s24
    %p33 = scmp.eq.s32.totalorder %s16, 1
    %p34 = por %p32, %p33
    %p35 = scmp.ne.s32.totalorder %s24, %s25
    %p36 = scmp.eq.s32.totalorder %s16, 0
    %p37 = por %p35, %p36
    %p38 = scmp.ne.s32.totalorder %s24, %s25
    %p39 = scmp.eq.s32.totalorder %s17, 1
    %p40 = por %p38, %p39
    %p42 = scmp.ne.s32.totalorder %s25, %s41
    %p43 = scmp.eq.s32.totalorder %s17, 0
    %p44 = por %p42, %p43
    %s46 = sadd.s32 %s45, 1
    %p49 = scmp.eq.s32.totalorder %s11, 1
    %p50 = scmp.ne.s32.totalorder %s45, %s47
    %p51 = scmp.eq.s32.totalorder %s11, 0
    %p52 = por %p50, %p51
    %p53 = scmp.ne.s32.totalorder %s45, %s47
    %p54 = scmp.eq.s32.totalorder %s16, 1
    %p55 = por %p53, %p54
    %p56 = scmp.ne.s32.totalorder %s47, %s48
    %p57 = scmp.eq.s32.totalorder %s16, 0
    %p58 = por %p56, %p57
    %p59 = scmp.ne.s32.totalorder %s47, %s48
    %p60 = scmp.eq.s32.totalorder %s17, 1
    %p61 = por %p59, %p60
    %p63 = scmp.ne.s32.totalorder %s48, %s62
    %p64 = scmp.eq.s32.totalorder %s17, 0
    %p65 = por %p63, %p64
    %s67 = sadd.s32 %s66, 1
    %p70 = scmp.eq.s32.totalorder %s11, 1
    %p71 = scmp.ne.s32.totalorder %s66, %s68
    %p72 = scmp.eq.s32.totalorder %s11, 0
    %p73 = por %p71, %p72
    %p74 = scmp.ne.s32.totalorder %s66, %s68
    %p75 = scmp.eq.s32.totalorder %s16, 1
    %p76 = por %p74, %p75
    %p77 = scmp.ne.s32.totalorder %s68, %s69
    %p78 = scmp.eq.s32.totalorder %s16, 0
    %p79 = por %p77, %p78
    %p80 = scmp.ne.s32.totalorder %s68, %s69
    %p81 = scmp.eq.s32.totalorder %s17, 1
    %p82 = por %p80, %p81
    %p84 = scmp.ne.s32.totalorder %s69, %s83
    %p85 = scmp.eq.s32.totalorder %s17, 0
    %p86 = por %p84, %p85
    %s87 = ssub.s32 %s11, %s18
    %p88 = scmp.eq.s32.totalorder %s87, 0
    %s90 = sadd.s32 %s89, 1
    %s91 = scalar_select %p88, %s89, %s90
    %p94 = pneg %p88
    %p95 = scmp.eq.s32.totalorder %s11, 1
    %p96 = por %p94, %p95
    %p97 = scmp.ne.s32.totalorder %s89, %s92
    %p98 = scmp.eq.s32.totalorder %s11, 0
    %p99 = por %p97, %p98
    %p100 = scmp.ne.s32.totalorder %s89, %s92
    %p101 = scmp.eq.s32.totalorder %s16, 1
    %p102 = por %p100, %p101
    %p103 = scmp.ne.s32.totalorder %s92, %s93
    %p104 = scmp.eq.s32.totalorder %s16, 0
    %p105 = por %p103, %p104
    %p106 = scmp.ne.s32.totalorder %s92, %s93
    %p107 = scmp.eq.s32.totalorder %s17, 1
    %p108 = por %p106, %p107
    %p110 = scmp.ne.s32.totalorder %s93, %s109
    %p111 = scmp.eq.s32.totalorder %s17, 0
    %p112 = por %p110, %p111
    %s113 = ssub.s32 %s11, %s18
    %p114 = scmp.eq.s32.totalorder %s113, 0
    %s116 = sadd.s32 %s115, 1
    %s117 = scalar_select %p114, %s115, %s116
    %p120 = pneg %p114
    %p121 = scmp.eq.s32.totalorder %s11, 1
    %p122 = por %p120, %p121
    %p123 = scmp.ne.s32.totalorder %s115, %s118
    %p124 = scmp.eq.s32.totalorder %s11, 0
    %p125 = por %p123, %p124
    %p126 = scmp.ne.s32.totalorder %s115, %s118
    %p127 = scmp.eq.s32.totalorder %s16, 1
    %p128 = por %p126, %p127
    %p129 = scmp.ne.s32.totalorder %s118, %s119
    %p130 = scmp.eq.s32.totalorder %s16, 0
    %p131 = por %p129, %p130
    %p132 = scmp.ne.s32.totalorder %s118, %s119
    %p133 = scmp.eq.s32.totalorder %s17, 1
    %p134 = por %p132, %p133
    %p136 = scmp.ne.s32.totalorder %s119, %s135
    %p137 = scmp.eq.s32.totalorder %s17, 0
    %p138 = por %p136, %p137
    %p139 = scmp.le.s32.totalorder 1, %s11
    %p140 = scmp.lt.s32.totalorder %s11, 3
    %p141 = pnand %p139, %p140
    %p142 = pneg %p141
    // Predicated region
    $region9: #{sepconv_forward.3} parent=5 // pred_check
      _
    $region10: #{sepconv_forward.3} parent=5 // pred_check_branch
      %144 = sbr.rel (%p141) target = $region12
    $region11: #{sepconv_forward.3} parent=5 // pred_region
      %s145 = ssub.s32 %s11, 1
      // Predicated region
      $region13: #{sepconv_forward.3} parent=11 // pred_check
        %p146 = pneg %p58
      $region14: #{sepconv_forward.3} parent=11 // pred_check_branch
        %148 = sbr.rel (%p146) target = $region16
      $region15: #{sepconv_forward.3} parent=11 // pred_region
        _
      $region16: #{sepconv_forward.3} parent=11 // pred_fallthru
        _
      // Predicated region
      $region17: #{sepconv_forward.3} parent=11 // pred_check
        %p149 = pneg %p79
      $region18: #{sepconv_forward.3} parent=11 // pred_check_branch
        %151 = sbr.rel (%p149) target = $region20
      $region19: #{sepconv_forward.3} parent=11 // pred_region
        _
      $region20: #{sepconv_forward.3} parent=11 // pred_fallthru
        _
    $region12: #{sepconv_forward.3} parent=5 // pred_fallthru
      _
    %p152 = scmp.lt.s32.totalorder %s11, 2
    // Predicated region
    $region21: #{sepconv_forward.3} parent=5 // pred_check
      %p153 = pneg %p152
    $region22: #{sepconv_forward.3} parent=5 // pred_check_branch
      %155 = sbr.rel (%p153) target = $region24
    $region23: #{sepconv_forward.3} parent=5 // pred_region
      // Predicated region
      $region25: #{sepconv_forward.3} parent=23 // pred_check
        %p156 = pneg %p31
      $region26: #{sepconv_forward.3} parent=23 // pred_check_branch
        %158 = sbr.rel (%p156) target = $region28
      $region27: #{sepconv_forward.3} parent=23 // pred_region
        %p159 = scmp.lt.s32.totalorder %s11, 1
        %s160 = scalar_select %p159, %s11, 1
        %s161 = smul.addr %s160, 8
        %s162 = smul.addr %s161, 8
        %s163 = scalar_lea.vmem %s0, %s162
      $region28: #{sepconv_forward.3} parent=23 // pred_fallthru
        _
    $region24: #{sepconv_forward.3} parent=5 // pred_fallthru
      _
    %p164 = scmp.le.s32.totalorder 1, %s11
    %p165 = scmp.lt.s32.totalorder %s11, 3
    %p166 = pnand %p164, %p165
    %p167 = pneg %p166
    // Predicated region
    $region29: #{sepconv_forward.3} parent=5 // pred_check
      _
    $region30: #{sepconv_forward.3} parent=5 // pred_check_branch
      %169 = sbr.rel (%p166) target = $region32
    $region31: #{sepconv_forward.3} parent=5 // pred_region
      %s170 = ssub.s32 %s11, 1
      %p171 = scmp.lt.s32.totalorder %s16, 1
      %s172 = scalar_select %p171, %s16, 1
      %s173 = smul.addr %s172, 8
      %s174 = smul.addr %s173, 8
      %s175 = scalar_lea.vmem %s0, %s174
      %p176 = pneg %p37
      %p177 = pneg %p34
      %p178 = pneg %p58
      %p179 = pneg %p55
      %p180 = pneg %p79
      %p181 = pneg %p76
      %p182 = pneg %p105
      %p183 = pneg %p102
      %p184 = scmp.lt.s32.totalorder %s16, 1
      %s185 = scalar_select %p184, %s16, 1
      %s186 = smul.addr %s185, 8
      %s187 = smul.addr %s186, 4
      %s188 = scalar_lea.vmem %s3, %s187
      %p189 = pneg %p131
      %p190 = pneg %p128
      %p191 = scmp.lt.s32.totalorder %s16, 1
      %s192 = scalar_select %p191, %s16, 1
      %s193 = smul.addr %s192, 2
      %s194 = scalar_lea.vmem %s4, %s193
      %p195 = scmp.lt.s32.totalorder %s16, 1
      %s196 = scalar_select %p195, %s16, 1
      %s197 = smul.addr %s196, 8
      %s198 = smul.addr %s197, 8
      %s199 = scalar_lea.vmem %s0, %s198
      %p200 = scmp.lt.s32.totalorder %s16, 1
      %s201 = scalar_select %p200, %s16, 1
      %s202 = smul.addr %s201, 8
      %s203 = smul.addr %s202, 4
      %s204 = scalar_lea.vmem %s3, %s203
      %p205 = scmp.lt.s32.totalorder %s16, 1
      %s206 = scalar_select %p205, %s16, 1
      %s207 = smul.addr %s206, 2
      %s208 = scalar_lea.vmem %s4, %s207
      %vm210 = vcmask 130048
      %211 = vst.msk [vmem:[#allocation2] sm:$0xff] %vm210, 0.0
      %vm212 = vcmask 122880
      %213 = vst.msk [vmem:[#allocation2 + $0x8] sm:$0x1] %vm212, 0.0
      %214 = vst.msk [vmem:[#allocation2 + $0x10] sm:$0xff] %vm210, 0.0
      %215 = vst.msk [vmem:[#allocation2 + $0x18] sm:$0x1] %vm212, 0.0
      %216 = vst.msk [vmem:[#allocation2 + $0x20] sm:$0xff] %vm210, 0.0
      %217 = vst.msk [vmem:[#allocation2 + $0x28] sm:$0x1] %vm212, 0.0
      %218 = vst.msk [vmem:[#allocation2 + $0x30] sm:$0xff] %vm210, 0.0
      %219 = vst.msk [vmem:[#allocation2 + $0x38] sm:$0x1] %vm212, 0.0
      %220 = vst.msk [vmem:[#allocation2 + $0x40] sm:$0xff] %vm210, 0.0
      %221 = vst.msk [vmem:[#allocation2 + $0x48] sm:$0x1] %vm212, 0.0
      %222 = vst.msk [vmem:[#allocation2 + $0x50] sm:$0xff] %vm210, 0.0
      %223 = vst.msk [vmem:[#allocation2 + $0x58] sm:$0x1] %vm212, 0.0
      %224 = vst.msk [vmem:[#allocation2 + $0x60] sm:$0xff] %vm210, 0.0
      %225 = vst.msk [vmem:[#allocation2 + $0x68] sm:$0x1] %vm212, 0.0
      %226 = vst.msk [vmem:[#allocation2 + $0x70] sm:$0xff] %vm210, 0.0
      %227 = vst.msk [vmem:[#allocation2 + $0x78] sm:$0x1] %vm212, 0.0
      %228 = vst.msk [vmem:[#allocation2 + $0x80] sm:$0xff] %vm210, 0.0
      %229 = vst.msk [vmem:[#allocation2 + $0x88] sm:$0x1] %vm212, 0.0
      %v230 = vld [vmem:[%s199] sm:$0xff]
      %v231 = vld [vmem:[%s199 + $0x8] sm:$0xff]
      %v232 = vld [vmem:[%s199 + $0x10] sm:$0xff]
      %v233 = vld [vmem:[%s199 + $0x18] sm:$0xff]
      %v234 = vld [vmem:[%s199 + $0x20] sm:$0xff]
      %v235 = vld [vmem:[%s199 + $0x28] sm:$0xff]
      %v236 = vld [vmem:[%s199 + $0x30] sm:$0xff]
      %v237 = vld [vmem:[%s199 + $0x38] sm:$0xff]
      %s238 = scalar_lea.vmem [#allocation2], 16
      %239 = vst.msk [vmem:[%s238 + $0x1] sm:$0xff] %vm210, %v230
      %240 = vst.msk [vmem:[%s238 + $0x11] sm:$0xff] %vm210, %v231
      %241 = vst.msk [vmem:[%s238 + $0x21] sm:$0xff] %vm210, %v232
      %242 = vst.msk [vmem:[%s238 + $0x31] sm:$0xff] %vm210, %v233
      %243 = vst.msk [vmem:[%s238 + $0x41] sm:$0xff] %vm210, %v234
      %244 = vst.msk [vmem:[%s238 + $0x51] sm:$0xff] %vm210, %v235
      %245 = vst.msk [vmem:[%s238 + $0x61] sm:$0xff] %vm210, %v236
      %246 = vst.msk [vmem:[%s238 + $0x71] sm:$0xff] %vm210, %v237
      %v247 = vld [vmem:[#allocation2] sm:$0xff]
      %v248 = vld [vmem:[#allocation2 + $0x10] sm:$0xff]
      %v249 = vld [vmem:[#allocation2 + $0x20] sm:$0xff]
      %v250 = vld [vmem:[#allocation2 + $0x30] sm:$0xff]
      %v251 = vld [vmem:[#allocation2 + $0x40] sm:$0xff]
      %v252 = vld [vmem:[#allocation2 + $0x50] sm:$0xff]
      %v253 = vld [vmem:[#allocation2 + $0x60] sm:$0xff]
      %v254 = vld [vmem:[#allocation2 + $0x70] sm:$0xff]
      %v255 = vld [vmem:[%s1] sm:$0x1]
      %v256 = vperm.slane %v255, 0
      %258 = vrot.lane.b32.xlu0 %v256, 12
      %v259 = vpop.permute.xlu0 %258
      %v261 = vmul.f32 %v247, %v259
      %v262 = vmul.f32 %v248, %v259
      %v263 = vmul.f32 %v249, %v259
      %v264 = vmul.f32 %v250, %v259
      %v265 = vmul.f32 %v251, %v259
      %v266 = vmul.f32 %v252, %v259
      %v267 = vmul.f32 %v253, %v259
      %v268 = vmul.f32 %v254, %v259
      %v269 = vadd.f32 %v261, 0.0
      %v270 = vadd.f32 %v262, 0.0
      %v271 = vadd.f32 %v263, 0.0
      %v272 = vadd.f32 %v264, 0.0
      %v273 = vadd.f32 %v265, 0.0
      %v274 = vadd.f32 %v266, 0.0
      %v275 = vadd.f32 %v267, 0.0
      %v276 = vadd.f32 %v268, 0.0
      %v277 = vld [vmem:[#allocation2 + $0x1] sm:$0xff]
      %v278 = vld [vmem:[#allocation2 + $0x11] sm:$0xff]
      %v279 = vld [vmem:[#allocation2 + $0x21] sm:$0xff]
      %v280 = vld [vmem:[#allocation2 + $0x31] sm:$0xff]
      %v281 = vld [vmem:[#allocation2 + $0x41] sm:$0xff]
      %v282 = vld [vmem:[#allocation2 + $0x51] sm:$0xff]
      %v283 = vld [vmem:[#allocation2 + $0x61] sm:$0xff]
      %v284 = vld [vmem:[#allocation2 + $0x71] sm:$0xff]
      %v285 = vld [vmem:[%s1 + $0x1] sm:$0x1]
      %v286 = vperm.slane %v285, 0
      %288 = vrot.lane.b32.xlu0 %v286, 8
      %v289 = vpop.permute.xlu0 %288
      %v291 = vmul.f32 %v277, %v289
      %v292 = vmul.f32 %v278, %v289
      %v293 = vmul.f32 %v279, %v289
      %v294 = vmul.f32 %v280, %v289
      %v295 = vmul.f32 %v281, %v289
      %v296 = vmul.f32 %v282, %v289
      %v297 = vmul.f32 %v283, %v289
      %v298 = vmul.f32 %v284, %v289
      %307 = vrot.lane.b32.xlu0 %v291, 4
      %v308 = vpop.permute.xlu0 %307
      %309 = vrot.lane.b32.xlu0 %v292, 4
      %v310 = vpop.permute.xlu0 %309
      %311 = vrot.lane.b32.xlu0 %v293, 4
      %v312 = vpop.permute.xlu0 %311
      %313 = vrot.lane.b32.xlu0 %v294, 4
      %v314 = vpop.permute.xlu0 %313
      %315 = vrot.lane.b32.xlu0 %v295, 4
      %v316 = vpop.permute.xlu0 %315
      %317 = vrot.lane.b32.xlu0 %v296, 4
      %v318 = vpop.permute.xlu0 %317
      %319 = vrot.lane.b32.xlu0 %v297, 4
      %v320 = vpop.permute.xlu0 %319
      %321 = vrot.lane.b32.xlu0 %v298, 4
      %v322 = vpop.permute.xlu0 %321
      %v331 = vadd.f32 %v269, %v308
      %v332 = vadd.f32 %v270, %v310
      %v333 = vadd.f32 %v271, %v312
      %v334 = vadd.f32 %v272, %v314
      %v335 = vadd.f32 %v273, %v316
      %v336 = vadd.f32 %v274, %v318
      %v337 = vadd.f32 %v275, %v320
      %v338 = vadd.f32 %v276, %v322
      %v339 = vld [vmem:[%s1 + $0x2] sm:$0x1]
      %v340 = vperm.slane %v339, 0
      %342 = vrot.lane.b32.xlu0 %v340, 12
      %v343 = vpop.permute.xlu0 %342
      %v345 = vmul.f32 %v277, %v343
      %v346 = vmul.f32 %v278, %v343
      %v347 = vmul.f32 %v279, %v343
      %v348 = vmul.f32 %v280, %v343
      %v349 = vmul.f32 %v281, %v343
      %v350 = vmul.f32 %v282, %v343
      %v351 = vmul.f32 %v283, %v343
      %v352 = vmul.f32 %v284, %v343
      %v353 = vadd.f32 %v331, %v345
      %v354 = vadd.f32 %v332, %v346
      %v355 = vadd.f32 %v333, %v347
      %v356 = vadd.f32 %v334, %v348
      %v357 = vadd.f32 %v335, %v349
      %v358 = vadd.f32 %v336, %v350
      %v359 = vadd.f32 %v337, %v351
      %v360 = vadd.f32 %v338, %v352
      %v361 = vld [vmem:[%s238] sm:$0xff]
      %v362 = vld [vmem:[%s238 + $0x10] sm:$0xff]
      %v363 = vld [vmem:[%s238 + $0x20] sm:$0xff]
      %v364 = vld [vmem:[%s238 + $0x30] sm:$0xff]
      %v365 = vld [vmem:[%s238 + $0x40] sm:$0xff]
      %v366 = vld [vmem:[%s238 + $0x50] sm:$0xff]
      %v367 = vld [vmem:[%s238 + $0x60] sm:$0xff]
      %v368 = vld [vmem:[%s238 + $0x70] sm:$0xff]
      %v369 = vld [vmem:[%s1 + $0x3] sm:$0x1]
      %v370 = vperm.slane %v369, 0
      %372 = vrot.lane.b32.xlu0 %v370, 4
      %v373 = vpop.permute.xlu0 %372
      %v375 = vmul.f32 %v361, %v373
      %v376 = vmul.f32 %v362, %v373
      %v377 = vmul.f32 %v363, %v373
      %v378 = vmul.f32 %v364, %v373
      %v379 = vmul.f32 %v365, %v373
      %v380 = vmul.f32 %v366, %v373
      %v381 = vmul.f32 %v367, %v373
      %v382 = vmul.f32 %v368, %v373
      %391 = vrot.lane.b32.xlu0 %v375, 8
      %v392 = vpop.permute.xlu0 %391
      %393 = vrot.lane.b32.xlu0 %v376, 8
      %v394 = vpop.permute.xlu0 %393
      %395 = vrot.lane.b32.xlu0 %v377, 8
      %v396 = vpop.permute.xlu0 %395
      %397 = vrot.lane.b32.xlu0 %v378, 8
      %v398 = vpop.permute.xlu0 %397
      %399 = vrot.lane.b32.xlu0 %v379, 8
      %v400 = vpop.permute.xlu0 %399
      %401 = vrot.lane.b32.xlu0 %v380, 8
      %v402 = vpop.permute.xlu0 %401
      %403 = vrot.lane.b32.xlu0 %v381, 8
      %v404 = vpop.permute.xlu0 %403
      %405 = vrot.lane.b32.xlu0 %v382, 8
      %v406 = vpop.permute.xlu0 %405
      %v415 = vadd.f32 %v353, %v392
      %v416 = vadd.f32 %v354, %v394
      %v417 = vadd.f32 %v355, %v396
      %v418 = vadd.f32 %v356, %v398
      %v419 = vadd.f32 %v357, %v400
      %v420 = vadd.f32 %v358, %v402
      %v421 = vadd.f32 %v359, %v404
      %v422 = vadd.f32 %v360, %v406
      %v423 = vld [vmem:[%s238 + $0x1] sm:$0xff]
      %v424 = vld [vmem:[%s238 + $0x11] sm:$0xff]
      %v425 = vld [vmem:[%s238 + $0x21] sm:$0xff]
      %v426 = vld [vmem:[%s238 + $0x31] sm:$0xff]
      %v427 = vld [vmem:[%s238 + $0x41] sm:$0xff]
      %v428 = vld [vmem:[%s238 + $0x51] sm:$0xff]
      %v429 = vld [vmem:[%s238 + $0x61] sm:$0xff]
      %v430 = vld [vmem:[%s238 + $0x71] sm:$0xff]
      %v431 = vld [vmem:[%s1 + $0x4] sm:$0x1]
      %v432 = vperm.slane %v431, 0
      %v433 = vmul.f32 %v423, %v432
      %v434 = vmul.f32 %v424, %v432
      %v435 = vmul.f32 %v425, %v432
      %v436 = vmul.f32 %v426, %v432
      %v437 = vmul.f32 %v427, %v432
      %v438 = vmul.f32 %v428, %v432
      %v439 = vmul.f32 %v429, %v432
      %v440 = vmul.f32 %v430, %v432
      %449 = vrot.lane.b32.xlu0 %v433, 12
      %v450 = vpop.permute.xlu0 %449
      %451 = vrot.lane.b32.xlu0 %v434, 12
      %v452 = vpop.permute.xlu0 %451
      %453 = vrot.lane.b32.xlu0 %v435, 12
      %v454 = vpop.permute.xlu0 %453
      %455 = vrot.lane.b32.xlu0 %v436, 12
      %v456 = vpop.permute.xlu0 %455
      %457 = vrot.lane.b32.xlu0 %v437, 12
      %v458 = vpop.permute.xlu0 %457
      %459 = vrot.lane.b32.xlu0 %v438, 12
      %v460 = vpop.permute.xlu0 %459
      %461 = vrot.lane.b32.xlu0 %v439, 12
      %v462 = vpop.permute.xlu0 %461
      %463 = vrot.lane.b32.xlu0 %v440, 12
      %v464 = vpop.permute.xlu0 %463
      %v473 = vadd.f32 %v415, %v450
      %v474 = vadd.f32 %v416, %v452
      %v475 = vadd.f32 %v417, %v454
      %v476 = vadd.f32 %v418, %v456
      %v477 = vadd.f32 %v419, %v458
      %v478 = vadd.f32 %v420, %v460
      %v479 = vadd.f32 %v421, %v462
      %v480 = vadd.f32 %v422, %v464
      %v481 = vld [vmem:[%s1 + $0x5] sm:$0x1]
      %v482 = vperm.slane %v481, 0
      %484 = vrot.lane.b32.xlu0 %v482, 4
      %v485 = vpop.permute.xlu0 %484
      %v487 = vmul.f32 %v423, %v485
      %v488 = vmul.f32 %v424, %v485
      %v489 = vmul.f32 %v425, %v485
      %v490 = vmul.f32 %v426, %v485
      %v491 = vmul.f32 %v427, %v485
      %v492 = vmul.f32 %v428, %v485
      %v493 = vmul.f32 %v429, %v485
      %v494 = vmul.f32 %v430, %v485
      %503 = vrot.lane.b32.xlu0 %v487, 8
      %v504 = vpop.permute.xlu0 %503
      %505 = vrot.lane.b32.xlu0 %v488, 8
      %v506 = vpop.permute.xlu0 %505
      %507 = vrot.lane.b32.xlu0 %v489, 8
      %v508 = vpop.permute.xlu0 %507
      %509 = vrot.lane.b32.xlu0 %v490, 8
      %v510 = vpop.permute.xlu0 %509
      %511 = vrot.lane.b32.xlu0 %v491, 8
      %v512 = vpop.permute.xlu0 %511
      %513 = vrot.lane.b32.xlu0 %v492, 8
      %v514 = vpop.permute.xlu0 %513
      %515 = vrot.lane.b32.xlu0 %v493, 8
      %v516 = vpop.permute.xlu0 %515
      %517 = vrot.lane.b32.xlu0 %v494, 8
      %v518 = vpop.permute.xlu0 %517
      %v527 = vadd.f32 %v473, %v504
      %v528 = vadd.f32 %v474, %v506
      %v529 = vadd.f32 %v475, %v508
      %v530 = vadd.f32 %v476, %v510
      %v531 = vadd.f32 %v477, %v512
      %v532 = vadd.f32 %v478, %v514
      %v533 = vadd.f32 %v479, %v516
      %v534 = vadd.f32 %v480, %v518
      %v535 = vld [vmem:[%s1 + $0x6] sm:$0x1]
      %v536 = vperm.slane %v535, 0
      %538 = vrot.lane.b32.xlu0 %v536, 12
      %v539 = vpop.permute.xlu0 %538
      %v541 = vmul.f32 %v361, %v539
      %v542 = vmul.f32 %v362, %v539
      %v543 = vmul.f32 %v363, %v539
      %v544 = vmul.f32 %v364, %v539
      %v545 = vmul.f32 %v365, %v539
      %v546 = vmul.f32 %v366, %v539
      %v547 = vmul.f32 %v367, %v539
      %v548 = vmul.f32 %v368, %v539
      %v549 = vadd.f32 %v527, %v541
      %v550 = vadd.f32 %v528, %v542
      %v551 = vadd.f32 %v529, %v543
      %v552 = vadd.f32 %v530, %v544
      %v553 = vadd.f32 %v531, %v545
      %v554 = vadd.f32 %v532, %v546
      %v555 = vadd.f32 %v533, %v547
      %v556 = vadd.f32 %v534, %v548
      %v557 = vld [vmem:[%s1 + $0x7] sm:$0x1]
      %v558 = vperm.slane %v557, 0
      %560 = vrot.lane.b32.xlu0 %v558, 8
      %v561 = vpop.permute.xlu0 %560
      %v563 = vmul.f32 %v423, %v561
      %v564 = vmul.f32 %v424, %v561
      %v565 = vmul.f32 %v425, %v561
      %v566 = vmul.f32 %v426, %v561
      %v567 = vmul.f32 %v427, %v561
      %v568 = vmul.f32 %v428, %v561
      %v569 = vmul.f32 %v429, %v561
      %v570 = vmul.f32 %v430, %v561
      %579 = vrot.lane.b32.xlu0 %v563, 4
      %v580 = vpop.permute.xlu0 %579
      %581 = vrot.lane.b32.xlu0 %v564, 4
      %v582 = vpop.permute.xlu0 %581
      %583 = vrot.lane.b32.xlu0 %v565, 4
      %v584 = vpop.permute.xlu0 %583
      %585 = vrot.lane.b32.xlu0 %v566, 4
      %v586 = vpop.permute.xlu0 %585
      %587 = vrot.lane.b32.xlu0 %v567, 4
      %v588 = vpop.permute.xlu0 %587
      %589 = vrot.lane.b32.xlu0 %v568, 4
      %v590 = vpop.permute.xlu0 %589
      %591 = vrot.lane.b32.xlu0 %v569, 4
      %v592 = vpop.permute.xlu0 %591
      %593 = vrot.lane.b32.xlu0 %v570, 4
      %v594 = vpop.permute.xlu0 %593
      %v603 = vadd.f32 %v549, %v580
      %v604 = vadd.f32 %v550, %v582
      %v605 = vadd.f32 %v551, %v584
      %v606 = vadd.f32 %v552, %v586
      %v607 = vadd.f32 %v553, %v588
      %v608 = vadd.f32 %v554, %v590
      %v609 = vadd.f32 %v555, %v592
      %v610 = vadd.f32 %v556, %v594
      %v611 = vld [vmem:[%s1 + $0x8] sm:$0x1]
      %v612 = vperm.slane %v611, 0
      %614 = vrot.lane.b32.xlu0 %v612, 12
      %v615 = vpop.permute.xlu0 %614
      %v617 = vmul.f32 %v423, %v615
      %v618 = vmul.f32 %v424, %v615
      %v619 = vmul.f32 %v425, %v615
      %v620 = vmul.f32 %v426, %v615
      %v621 = vmul.f32 %v427, %v615
      %v622 = vmul.f32 %v428, %v615
      %v623 = vmul.f32 %v429, %v615
      %v624 = vmul.f32 %v430, %v615
      %v625 = vadd.f32 %v603, %v617
      %v626 = vadd.f32 %v604, %v618
      %v627 = vadd.f32 %v605, %v619
      %v628 = vadd.f32 %v606, %v620
      %v629 = vadd.f32 %v607, %v621
      %v630 = vadd.f32 %v608, %v622
      %v631 = vadd.f32 %v609, %v623
      %v632 = vadd.f32 %v610, %v624
      %v633 = vpack.c.bf16 %v626, %v625
      %v634 = vpack.c.bf16 %v628, %v627
      %v635 = vpack.c.bf16 %v630, %v629
      %v636 = vpack.c.bf16 %v632, %v631
      %v637 = vld [vmem:[%s2] sm:$0xf]
      %v638 = vpack.c.bf16 %v637, %v637
      %643 = vrot.lane.b32.xlu0 %v633, 116
      %v644 = vpop.permute.xlu0 %643
      %645 = vrot.lane.b32.xlu0 %v634, 116
      %v646 = vpop.permute.xlu0 %645
      %647 = vrot.lane.b32.xlu0 %v635, 116
      %v648 = vpop.permute.xlu0 %647
      %649 = vrot.lane.b32.xlu0 %v636, 116
      %v650 = vpop.permute.xlu0 %649
      %vm651 = vcmask 31744
      %v653 = vsel %vm651, %v644, 0
      %v656 = vsel %vm651, %v646, 0
      %v659 = vsel %vm651, %v648, 0
      %v662 = vsel %vm651, %v650, 0
      %vm664 = vcmask 1041408
      %v666 = vsel %vm664, %v638, 0
      %668 = vmatpush.bf16.msra.mxu0 0
      %669 = vmatpush.bf16.msra.mxu0 0
      %670 = vmatpush.bf16.msra.mxu0 0
      %671 = vmatpush.bf16.msra.mxu0 0
      %672 = vmatpush.bf16.msra.mxu0 0
      %673 = vmatpush.bf16.msra.mxu0 0
      %674 = vmatpush.bf16.msra.mxu0 0
      %675 = vmatpush.bf16.msra.mxu0 %v666
      %676 = vmatmul.bf16.gmra.mxu0 %v653
      %v677 = vpop.f32.mrf.mxu0
      %v678 = vadd.f32 0.0, %v677
      %v679 = vpop.f32.mrf.mxu0
      %v680 = vadd.f32 0.0, %v679
      %681 = vmatmul.bf16.gmra.mxu0 %v656
      %v682 = vpop.f32.mrf.mxu0
      %v683 = vadd.f32 0.0, %v682
      %v684 = vpop.f32.mrf.mxu0
      %v685 = vadd.f32 0.0, %v684
      %686 = vmatmul.bf16.gmra.mxu0 %v659
      %v687 = vpop.f32.mrf.mxu0
      %v688 = vadd.f32 0.0, %v687
      %v689 = vpop.f32.mrf.mxu0
      %v690 = vadd.f32 0.0, %v689
      %691 = vmatmul.bf16.gmra.mxu0 %v662
      %v692 = vpop.f32.mrf.mxu0
      %v693 = vadd.f32 0.0, %v692
      %v694 = vpop.f32.mrf.mxu0
      %v695 = vadd.f32 0.0, %v694
      %696 = vdwg.mxu0
      %v697 = vsel %vm651, %v678, 0.0
      %v698 = vsel %vm651, %v680, 0.0
      %v699 = vadd.f32 %v697, %v698
      %v700 = vsel %vm651, %v683, 0.0
      %v701 = vadd.f32 %v699, %v700
      %v702 = vsel %vm651, %v685, 0.0
      %v703 = vadd.f32 %v701, %v702
      %v704 = vsel %vm651, %v688, 0.0
      %v705 = vadd.f32 %v703, %v704
      %v706 = vsel %vm651, %v690, 0.0
      %v707 = vadd.f32 %v705, %v706
      %v708 = vsel %vm651, %v693, 0.0
      %v709 = vadd.f32 %v707, %v708
      %v710 = vsel %vm651, %v695, 0.0
      %v711 = vadd.f32 %v709, %v710
      %v712 = vrot.slane %v711, 4
      %v713 = vadd.f32 %v711, %v712
      %v714 = vrot.slane %v713, 2
      %v715 = vadd.f32 %v713, %v714
      %v716 = vrot.slane %v715, 1
      %v717 = vadd.f32 %v715, %v716
      %vm718 = vcmask 24576
      %719 = vst.msk [vmem:[%s208] sm:$0x1] %vm718, %v717
      %v720 = vmul.f32 %v678, %v678
      %v721 = vmul.f32 %v680, %v680
      %v722 = vmul.f32 %v683, %v683
      %v723 = vmul.f32 %v685, %v685
      %v724 = vmul.f32 %v688, %v688
      %v725 = vmul.f32 %v690, %v690
      %v726 = vmul.f32 %v693, %v693
      %v727 = vmul.f32 %v695, %v695
      %v728 = vsel %vm651, %v720, 0.0
      %v729 = vsel %vm651, %v721, 0.0
      %v730 = vadd.f32 %v728, %v729
      %v731 = vsel %vm651, %v722, 0.0
      %v732 = vadd.f32 %v730, %v731
      %v733 = vsel %vm651, %v723, 0.0
      %v734 = vadd.f32 %v732, %v733
      %v735 = vsel %vm651, %v724, 0.0
      %v736 = vadd.f32 %v734, %v735
      %v737 = vsel %vm651, %v725, 0.0
      %v738 = vadd.f32 %v736, %v737
      %v739 = vsel %vm651, %v726, 0.0
      %v740 = vadd.f32 %v738, %v739
      %v741 = vsel %vm651, %v727, 0.0
      %v742 = vadd.f32 %v740, %v741
      %v743 = vrot.slane %v742, 4
      %v744 = vadd.f32 %v742, %v743
      %v745 = vrot.slane %v744, 2
      %v746 = vadd.f32 %v744, %v745
      %v747 = vrot.slane %v746, 1
      %v748 = vadd.f32 %v746, %v747
      %749 = vst.msk [vmem:[%s208 + $0x1] sm:$0x1] %vm718, %v748
      %v750 = vpack.c.bf16 %v678, %v678
      %v751 = vpack.c.bf16 %v680, %v680
      %v752 = vpack.c.bf16 %v683, %v683
      %v753 = vpack.c.bf16 %v685, %v685
      %v754 = vpack.c.bf16 %v688, %v688
      %v755 = vpack.c.bf16 %v690, %v690
      %v756 = vpack.c.bf16 %v693, %v693
      %v757 = vpack.c.bf16 %v695, %v695
      %vm758 = vcmask 27648
      %759 = vst.msk [vmem:[%s204] sm:$0xf] %vm758, %v750
      %760 = vst.msk [vmem:[%s204 + $0x4] sm:$0xf] %vm758, %v751
      %761 = vst.msk [vmem:[%s204 + $0x8] sm:$0xf] %vm758, %v752
      %762 = vst.msk [vmem:[%s204 + $0xc] sm:$0xf] %vm758, %v753
      %763 = vst.msk [vmem:[%s204 + $0x10] sm:$0xf] %vm758, %v754
      %764 = vst.msk [vmem:[%s204 + $0x14] sm:$0xf] %vm758, %v755
      %765 = vst.msk [vmem:[%s204 + $0x18] sm:$0xf] %vm758, %v756
      %766 = vst.msk [vmem:[%s204 + $0x1c] sm:$0xf] %vm758, %v757
      %p767 = scmp.lt.s32.totalorder %s16, 1
      %s768 = scalar_select %p767, %s16, 1
      %s769 = smul.addr %s768, 8
      %s770 = smul.addr %s769, 4
      %s771 = scalar_lea.vmem %s3, %s770
      %p772 = scmp.lt.s32.totalorder %s16, 1
      %s773 = scalar_select %p772, %s16, 1
      %s774 = smul.addr %s773, 2
      %s775 = scalar_lea.vmem %s4, %s774
      // Predicated region
      $region33: #{sepconv_forward.3} parent=31 // pred_check
        %p776 = pneg %p102
      $region34: #{sepconv_forward.3} parent=31 // pred_check_branch
        %778 = sbr.rel (%p776) target = $region36
      $region35: #{sepconv_forward.3} parent=31 // pred_region
        _
      $region36: #{sepconv_forward.3} parent=31 // pred_fallthru
        _
      // Predicated region
      $region37: #{sepconv_forward.3} parent=31 // pred_check
        %p779 = pneg %p128
      $region38: #{sepconv_forward.3} parent=31 // pred_check_branch
        %781 = sbr.rel (%p779) target = $region40
      $region39: #{sepconv_forward.3} parent=31 // pred_region
        _
      $region40: #{sepconv_forward.3} parent=31 // pred_fallthru
        _
    $region32: #{sepconv_forward.3} parent=5 // pred_fallthru
      _
    %p782 = scmp.le.s32.totalorder 2, %s11
    // Predicated region
    $region41: #{sepconv_forward.3} parent=5 // pred_check
      %p783 = pneg %p782
    $region42: #{sepconv_forward.3} parent=5 // pred_check_branch
      %785 = sbr.rel (%p783) target = $region44
    $region43: #{sepconv_forward.3} parent=5 // pred_region
      %s786 = ssub.s32 %s11, 2
      // Predicated region
      $region45: #{sepconv_forward.3} parent=43 // pred_check
        %p787 = pneg %p108
      $region46: #{sepconv_forward.3} parent=43 // pred_check_branch
        %789 = sbr.rel (%p787) target = $region48
      $region47: #{sepconv_forward.3} parent=43 // pred_region
        %p790 = scmp.lt.s32.totalorder %s17, 1
        %s791 = scalar_select %p790, %s17, 1
        %s792 = smul.addr %s791, 8
        %s793 = smul.addr %s792, 4
        %s794 = scalar_lea.vmem %s3, %s793
      $region48: #{sepconv_forward.3} parent=43 // pred_fallthru
        _
      // Predicated region
      $region49: #{sepconv_forward.3} parent=43 // pred_check
        %p795 = pneg %p134
      $region50: #{sepconv_forward.3} parent=43 // pred_check_branch
        %797 = sbr.rel (%p795) target = $region52
      $region51: #{sepconv_forward.3} parent=43 // pred_region
        %p798 = scmp.lt.s32.totalorder %s17, 1
        %s799 = scalar_select %p798, %s17, 1
        %s800 = smul.addr %s799, 2
        %s801 = scalar_lea.vmem %s4, %s800
      $region52: #{sepconv_forward.3} parent=43 // pred_fallthru
        _
    $region44: #{sepconv_forward.3} parent=5 // pred_fallthru
      _
  $region6: #{sepconv_forward.3} parent=0 // loop_footer
    %s15 = sadd.s32 1, %s11
  $region7: #{sepconv_forward.3} parent=0 // loop_footer_branch
    %10 = sbr.rel target = $region3
  $region8: #{sepconv_forward.3} parent=0 // loop_exit
    _

// kernel: sepconv_forward.4
$region0: #{sepconv_forward.4}
  #allocation0 [shape = 'u32[]', space=smem, size = 0x4, offset = 0x4, fixed_abs, tag = 'smem constant byte address 0x4 - core index']
  #allocation1 [shape = 'u32[72,128]{1,0:T(1,128)}', space=vmem, size = 0x9000, scoped, tag = 'internal scratch']
  #allocation2 [shape = 'f32[10,10,4]{2,1,0:T(8,128)}', space=vmem, size = 0x14000, scoped, tag = 'scratch operand']
  %s0 = inlined_call_operand.vmem [shape: bf16[2,8,8,4], index: 0, kind: input, shape index: {}]
  %s1 = inlined_call_operand.vmem [shape: f32[1,4], index: 1, kind: input, shape index: {}]
  %s2 = inlined_call_operand.vmem [shape: f32[1,4], index: 2, kind: input, shape index: {}]
  %s3 = inlined_call_operand.vmem [shape: f32[9,4], index: 3, kind: input, shape index: {}]
  %s4 = inlined_call_operand.vmem [shape: f32[4,8], index: 4, kind: input, shape index: {}]
  %s5 = inlined_call_operand.vmem [shape: bf16[2,8,8,8], index: 5, kind: output, shape index: {0}]
  %s6 = inlined_call_operand.vmem [shape: f32[2,2,8], index: 6, kind: output, shape index: {1}]
  %7 = xla_tuple %s5, %s6
  %s8 = sld [smem:[#allocation0]]
  $region61: #{sepconv_forward.4} parent=0
    _
  %s10 = ssub.s32 1, %s8
  %s11 = scalar_select 0, %s10, %s8
  loop: start=0, step=1, limit=4
  $region2: #{sepconv_forward.4} parent=0 // loop_pre_header
    _
  $region3: #{sepconv_forward.4} parent=0 // loop_header
    %s13 = sphi 0, %s17
    %p14 = scmp.ge.s32.totalorder %s13, 4
    %s23 = sphi 0, %s25
    %s26 = sphi 0, %s23
    %s27 = sphi 0, %s26
    %s43 = sphi 0, %s27
    %s47 = sphi 0, %s47
    %s49 = sphi 0, %s47
    %s50 = sphi 0, %s49
    %s64 = sphi 0, %s50
    %s68 = sphi 0, %s68
    %s70 = sphi 0, %s68
    %s71 = sphi 0, %s70
    %s85 = sphi 0, %s71
    %s89 = sphi 0, %s89
    %s91 = sphi 0, %s89
    %s92 = sphi 0, %s91
    %s106 = sphi 0, %s92
    %s110 = sphi 0, %s110
    %s112 = sphi 0, %s110
    %s113 = sphi 0, %s112
    %s127 = sphi 0, %s113
    %s133 = sphi 0, %s135
    %s136 = sphi 0, %s133
    %s137 = sphi 0, %s136
    %s153 = sphi 0, %s137
    %s159 = sphi 0, %s161
    %s162 = sphi 0, %s159
    %s163 = sphi 0, %s162
    %s179 = sphi 0, %s163
  $region4: #{sepconv_forward.4} parent=0 // loop_header_branch
    %16 = sbr.rel (%p14) target = $region8
  $region5: #{sepconv_forward.4} parent=0 // loop_body
    %s18 = ssub.s32 %s13, 1
    %s19 = ssub.s32 %s13, 2
    %s20 = sadd.s32 %s13, 1
    %s21 = ssub.s32 %s13, %s20
    %p22 = scmp.eq.s32.totalorder %s21, 0
    %s24 = sadd.s32 %s23, 1
    %s25 = scalar_select %p22, %s23, %s24
    %p28 = pneg %p22
    %p29 = scmp.eq.s32.totalorder %s13, 1
    %p30 = por %p28, %p29
    %p31 = scmp.ne.s32.totalorder %s23, %s26
    %p32 = scmp.eq.s32.totalorder %s13, 0
    %p33 = por %p31, %p32
    %p34 = scmp.ne.s32.totalorder %s23, %s26
    %p35 = scmp.eq.s32.totalorder %s18, 1
    %p36 = por %p34, %p35
    %p37 = scmp.ne.s32.totalorder %s26, %s27
    %p38 = scmp.eq.s32.totalorder %s18, 0
    %p39 = por %p37, %p38
    %p40 = scmp.ne.s32.totalorder %s26, %s27
    %p41 = scmp.eq.s32.totalorder %s19, 1
    %p42 = por %p40, %p41
    %p44 = scmp.ne.s32.totalorder %s27, %s43
    %p45 = scmp.eq.s32.totalorder %s19, 0
    %p46 = por %p44, %p45
    %s48 = sadd.s32 %s47, 1
    %p51 = scmp.eq.s32.totalorder %s13, 1
    %p52 = scmp.ne.s32.totalorder %s47, %s49
    %p53 = scmp.eq.s32.totalorder %s13, 0
    %p54 = por %p52, %p53
    %p55 = scmp.ne.s32.totalorder %s47, %s49
    %p56 = scmp.eq.s32.totalorder %s18, 1
    %p57 = por %p55, %p56
    %p58 = scmp.ne.s32.totalorder %s49, %s50
    %p59 = scmp.eq.s32.totalorder %s18, 0
    %p60 = por %p58, %p59
    %p61 = scmp.ne.s32.totalorder %s49, %s50
    %p62 = scmp.eq.s32.totalorder %s19, 1
    %p63 = por %p61, %p62
    %p65 = scmp.ne.s32.totalorder %s50, %s64
    %p66 = scmp.eq.s32.totalorder %s19, 0
    %p67 = por %p65, %p66
    %s69 = sadd.s32 %s68, 1
    %p72 = scmp.eq.s32.totalorder %s13, 1
    %p73 = scmp.ne.s32.totalorder %s68, %s70
    %p74 = scmp.eq.s32.totalorder %s13, 0
    %p75 = por %p73, %p74
    %p76 = scmp.ne.s32.totalorder %s68, %s70
    %p77 = scmp.eq.s32.totalorder %s18, 1
    %p78 = por %p76, %p77
    %p79 = scmp.ne.s32.totalorder %s70, %s71
    %p80 = scmp.eq.s32.totalorder %s18, 0
    %p81 = por %p79, %p80
    %p82 = scmp.ne.s32.totalorder %s70, %s71
    %p83 = scmp.eq.s32.totalorder %s19, 1
    %p84 = por %p82, %p83
    %p86 = scmp.ne.s32.totalorder %s71, %s85
    %p87 = scmp.eq.s32.totalorder %s19, 0
    %p88 = por %p86, %p87
    %s90 = sadd.s32 %s89, 1
    %p93 = scmp.eq.s32.totalorder %s13, 1
    %p94 = scmp.ne.s32.totalorder %s89, %s91
    %p95 = scmp.eq.s32.totalorder %s13, 0
    %p96 = por %p94, %p95
    %p97 = scmp.ne.s32.totalorder %s89, %s91
    %p98 = scmp.eq.s32.totalorder %s18, 1
    %p99 = por %p97, %p98
    %p100 = scmp.ne.s32.totalorder %s91, %s92
    %p101 = scmp.eq.s32.totalorder %s18, 0
    %p102 = por %p100, %p101
    %p103 = scmp.ne.s32.totalorder %s91, %s92
    %p104 = scmp.eq.s32.totalorder %s19, 1
    %p105 = por %p103, %p104
    %p107 = scmp.ne.s32.totalorder %s92, %s106
    %p108 = scmp.eq.s32.totalorder %s19, 0
    %p109 = por %p107, %p108
    %s111 = sadd.s32 %s110, 1
    %p114 = scmp.eq.s32.totalorder %s13, 1
    %p115 = scmp.ne.s32.totalorder %s110, %s112
    %p116 = scmp.eq.s32.totalorder %s13, 0
    %p117 = por %p115, %p116
    %p118 = scmp.ne.s32.totalorder %s110, %s112
    %p119 = scmp.eq.s32.totalorder %s18, 1
    %p120 = por %p118, %p119
    %p121 = scmp.ne.s32.totalorder %s112, %s113
    %p122 = scmp.eq.s32.totalorder %s18, 0
    %p123 = por %p121, %p122
    %p124 = scmp.ne.s32.totalorder %s112, %s113
    %p125 = scmp.eq.s32.totalorder %s19, 1
    %p126 = por %p124, %p125
    %p128 = scmp.ne.s32.totalorder %s113, %s127
    %p129 = scmp.eq.s32.totalorder %s19, 0
    %p130 = por %p128, %p129
    %s131 = ssub.s32 %s13, %s20
    %p132 = scmp.eq.s32.totalorder %s131, 0
    %s134 = sadd.s32 %s133, 1
    %s135 = scalar_select %p132, %s133, %s134
    %p138 = pneg %p132
    %p139 = scmp.eq.s32.totalorder %s13, 1
    %p140 = por %p138, %p139
    %p141 = scmp.ne.s32.totalorder %s133, %s136
    %p142 = scmp.eq.s32.totalorder %s13, 0
    %p143 = por %p141, %p142
    %p144 = scmp.ne.s32.totalorder %s133, %s136
    %p145 = scmp.eq.s32.totalorder %s18, 1
    %p146 = por %p144, %p145
    %p147 = scmp.ne.s32.totalorder %s136, %s137
    %p148 = scmp.eq.s32.totalorder %s18, 0
    %p149 = por %p147, %p148
    %p150 = scmp.ne.s32.totalorder %s136, %s137
    %p151 = scmp.eq.s32.totalorder %s19, 1
    %p152 = por %p150, %p151
    %p154 = scmp.ne.s32.totalorder %s137, %s153
    %p155 = scmp.eq.s32.totalorder %s19, 0
    %p156 = por %p154, %p155
    %s157 = ssub.s32 %s13, %s20
    %p158 = scmp.eq.s32.totalorder %s157, 0
    %s160 = sadd.s32 %s159, 1
    %s161 = scalar_select %p158, %s159, %s160
    %p164 = pneg %p158
    %p165 = scmp.eq.s32.totalorder %s13, 1
    %p166 = por %p164, %p165
    %p167 = scmp.ne.s32.totalorder %s159, %s162
    %p168 = scmp.eq.s32.totalorder %s13, 0
    %p169 = por %p167, %p168
    %p170 = scmp.ne.s32.totalorder %s159, %s162
    %p171 = scmp.eq.s32.totalorder %s18, 1
    %p172 = por %p170, %p171
    %p173 = scmp.ne.s32.totalorder %s162, %s163
    %p174 = scmp.eq.s32.totalorder %s18, 0
    %p175 = por %p173, %p174
    %p176 = scmp.ne.s32.totalorder %s162, %s163
    %p177 = scmp.eq.s32.totalorder %s19, 1
    %p178 = por %p176, %p177
    %p180 = scmp.ne.s32.totalorder %s163, %s179
    %p181 = scmp.eq.s32.totalorder %s19, 0
    %p182 = por %p180, %p181
    %p183 = scmp.le.s32.totalorder 1, %s13
    %p184 = scmp.lt.s32.totalorder %s13, 3
    %p185 = pnand %p183, %p184
    %p186 = pneg %p185
    // Predicated region
    $region9: #{sepconv_forward.4} parent=5 // pred_check
      _
    $region10: #{sepconv_forward.4} parent=5 // pred_check_branch
      %188 = sbr.rel (%p185) target = $region12
    $region11: #{sepconv_forward.4} parent=5 // pred_region
      %s189 = ssub.s32 %s13, 1
      // Predicated region
      $region13: #{sepconv_forward.4} parent=11 // pred_check
        %p190 = pneg %p60
      $region14: #{sepconv_forward.4} parent=11 // pred_check_branch
        %192 = sbr.rel (%p190) target = $region16
      $region15: #{sepconv_forward.4} parent=11 // pred_region
        _
      $region16: #{sepconv_forward.4} parent=11 // pred_fallthru
        _
      // Predicated region
      $region17: #{sepconv_forward.4} parent=11 // pred_check
        %p193 = pneg %p81
      $region18: #{sepconv_forward.4} parent=11 // pred_check_branch
        %195 = sbr.rel (%p193) target = $region20
      $region19: #{sepconv_forward.4} parent=11 // pred_region
        _
      $region20: #{sepconv_forward.4} parent=11 // pred_fallthru
        _
      // Predicated region
      $region21: #{sepconv_forward.4} parent=11 // pred_check
        %p196 = pneg %p102
      $region22: #{sepconv_forward.4} parent=11 // pred_check_branch
        %198 = sbr.rel (%p196) target = $region24
      $region23: #{sepconv_forward.4} parent=11 // pred_region
        _
      $region24: #{sepconv_forward.4} parent=11 // pred_fallthru
        _
      // Predicated region
      $region25: #{sepconv_forward.4} parent=11 // pred_check
        %p199 = pneg %p123
      $region26: #{sepconv_forward.4} parent=11 // pred_check_branch
        %201 = sbr.rel (%p199) target = $region28
      $region27: #{sepconv_forward.4} parent=11 // pred_region
        _
      $region28: #{sepconv_forward.4} parent=11 // pred_fallthru
        _
    $region12: #{sepconv_forward.4} parent=5 // pred_fallthru
      _
    %p202 = scmp.lt.s32.totalorder %s13, 2
    // Predicated region
    $region29: #{sepconv_forward.4} parent=5 // pred_check
      %p203 = pneg %p202
    $region30: #{sepconv_forward.4} parent=5 // pred_check_branch
      %205 = sbr.rel (%p203) target = $region32
    $region31: #{sepconv_forward.4} parent=5 // pred_region
      // Predicated region
      $region33: #{sepconv_forward.4} parent=31 // pred_check
        %p206 = pneg %p33
      $region34: #{sepconv_forward.4} parent=31 // pred_check_branch
        %208 = sbr.rel (%p206) target = $region36
      $region35: #{sepconv_forward.4} parent=31 // pred_region
        %p209 = scmp.lt.s32.totalorder %s13, 1
        %s210 = scalar_select %p209, %s13, 1
        %s211 = smul.addr %s210, 8
        %s212 = smul.addr %s211, 4
        %s213 = scalar_lea.vmem %s0, %s212
      $region36: #{sepconv_forward.4} parent=31 // pred_fallthru
        _
    $region32: #{sepconv_forward.4} parent=5 // pred_fallthru
      _
    %p214 = scmp.le.s32.totalorder 1, %s13
    %p215 = scmp.lt.s32.totalorder %s13, 3
    %p216 = pnand %p214, %p215
    %p217 = pneg %p216
    // Predicated region
    $region37: #{sepconv_forward.4} parent=5 // pred_check
      _
    $region38: #{sepconv_forward.4} parent=5 // pred_check_branch
      %219 = sbr.rel (%p216) target = $region40
    $region39: #{sepconv_forward.4} parent=5 // pred_region
      %s220 = ssub.s32 %s13, 1
      %p221 = scmp.lt.s32.totalorder %s18, 1
      %s222 = scalar_select %p221, %s18, 1
      %s223 = smul.addr %s222, 8
      %s224 = smul.addr %s223, 4
      %s225 = scalar_lea.vmem %s0, %s224
      %p226 = pneg %p39
      %p227 = pneg %p36
      %p228 = pneg %p60
      %p229 = pneg %p57
      %p230 = pneg %p81
      %p231 = pneg %p78
      %p232 = pneg %p102
      %p233 = pneg %p99
      %p234 = pneg %p123
      %p235 = pneg %p120
      %p236 = pneg %p149
      %p237 = pneg %p146
      %p238 = scmp.lt.s32.totalorder %s18, 1
      %s239 = scalar_select %p238, %s18, 1
      %s240 = smul.addr %s239, 8
      %s241 = smul.addr %s240, 4
      %s242 = scalar_lea.vmem %s5, %s241
      %p243 = pneg %p175
      %p244 = pneg %p172
      %p245 = scmp.lt.s32.totalorder %s18, 1
      %s246 = scalar_select %p245, %s18, 1
      %s247 = smul.addr %s246, 2
      %s248 = scalar_lea.vmem %s6, %s247
      %p249 = scmp.lt.s32.totalorder %s18, 1
      %s250 = scalar_select %p249, %s18, 1
      %s251 = smul.addr %s250, 8
      %s252 = smul.addr %s251, 4
      %s253 = scalar_lea.vmem %s0, %s252
      %p254 = scmp.lt.s32.totalorder %s18, 1
      %s255 = scalar_select %p254, %s18, 1
      %s256 = smul.addr %s255, 8
      %s257 = smul.addr %s256, 4
      %s258 = scalar_lea.vmem %s5, %s257
      %p259 = scmp.lt.s32.totalorder %s18, 1
      %s260 = scalar_select %p259, %s18, 1
      %s261 = smul.addr %s260, 2
      %s262 = scalar_lea.vmem %s6, %s261
      %v264 = vld [vmem:[%s253] sm:$0xf]
      %v265 = vld [vmem:[%s253 + $0x4] sm:$0xf]
      %v266 = vld [vmem:[%s253 + $0x8] sm:$0xf]
      %v267 = vld [vmem:[%s253 + $0xc] sm:$0xf]
      %v268 = vld [vmem:[%s253 + $0x10] sm:$0xf]
      %v269 = vld [vmem:[%s253 + $0x14] sm:$0xf]
      %v270 = vld [vmem:[%s253 + $0x18] sm:$0xf]
      %v271 = vld [vmem:[%s253 + $0x1c] sm:$0xf]
      %v272 = vunpack.c.l.bf16 %v264
      %v273 = vunpack.c.l.bf16 %v265
      %v274 = vunpack.c.l.bf16 %v266
      %v275 = vunpack.c.l.bf16 %v267
      %v276 = vunpack.c.l.bf16 %v268
      %v277 = vunpack.c.l.bf16 %v269
      %v278 = vunpack.c.l.bf16 %v270
      %v279 = vunpack.c.l.bf16 %v271
      %v280 = vld [vmem:[%s1] sm:$0x1]
      %v282 = vperm.slane %v280, 0
      %v284 = vmul.f32 %v272, %v282
      %v285 = vmul.f32 %v273, %v282
      %v286 = vmul.f32 %v274, %v282
      %v287 = vmul.f32 %v275, %v282
      %v288 = vmul.f32 %v276, %v282
      %v289 = vmul.f32 %v277, %v282
      %v290 = vmul.f32 %v278, %v282
      %v291 = vmul.f32 %v279, %v282
      %v292 = vld [vmem:[%s2] sm:$0x1]
      %v294 = vperm.slane %v292, 0
      %v296 = vadd.f32 %v284, %v294
      %v297 = vadd.f32 %v285, %v294
      %v298 = vadd.f32 %v286, %v294
      %v299 = vadd.f32 %v287, %v294
      %v300 = vadd.f32 %v288, %v294
      %v301 = vadd.f32 %v289, %v294
      %v302 = vadd.f32 %v290, %v294
      %v303 = vadd.f32 %v291, %v294
      %v304 = vmax.f32 %v296, 0.0
      %v305 = vmax.f32 %v297, 0.0
      %v306 = vmax.f32 %v298, 0.0
      %v307 = vmax.f32 %v299, 0.0
      %v308 = vmax.f32 %v300, 0.0
      %v309 = vmax.f32 %v301, 0.0
      %v310 = vmax.f32 %v302, 0.0
      %v311 = vmax.f32 %v303, 0.0
      %vm312 = vcmask 31744
      %313 = vst.msk [vmem:[#allocation2] sm:$0xff] %vm312, 0.0
      %vm314 = vcmask 25600
      %315 = vst.msk [vmem:[#allocation2 + $0x8] sm:$0x3] %vm314, 0.0
      %316 = vst.msk [vmem:[#allocation2 + $0x10] sm:$0xff] %vm312, 0.0
      %317 = vst.msk [vmem:[#allocation2 + $0x18] sm:$0x3] %vm314, 0.0
      %318 = vst.msk [vmem:[#allocation2 + $0x20] sm:$0xff] %vm312, 0.0
      %319 = vst.msk [vmem:[#allocation2 + $0x28] sm:$0x3] %vm314, 0.0
      %320 = vst.msk [vmem:[#allocation2 + $0x30] sm:$0xff] %vm312, 0.0
      %321 = vst.msk [vmem:[#allocation2 + $0x38] sm:$0x3] %vm314, 0.0
      %322 = vst.msk [vmem:[#allocation2 + $0x40] sm:$0xff] %vm312, 0.0
      %323 = vst.msk [vmem:[#allocation2 + $0x48] sm:$0x3] %vm314, 0.0
      %324 = vst.msk [vmem:[#allocation2 + $0x50] sm:$0xff] %vm312, 0.0
      %325 = vst.msk [vmem:[#allocation2 + $0x58] sm:$0x3] %vm314, 0.0
      %326 = vst.msk [vmem:[#allocation2 + $0x60] sm:$0xff] %vm312, 0.0
      %327 = vst.msk [vmem:[#allocation2 + $0x68] sm:$0x3] %vm314, 0.0
      %328 = vst.msk [vmem:[#allocation2 + $0x70] sm:$0xff] %vm312, 0.0
      %329 = vst.msk [vmem:[#allocation2 + $0x78] sm:$0x3] %vm314, 0.0
      %330 = vst.msk [vmem:[#allocation2 + $0x80] sm:$0xff] %vm312, 0.0
      %331 = vst.msk [vmem:[#allocation2 + $0x88] sm:$0x3] %vm314, 0.0
      %332 = vst.msk [vmem:[#allocation2 + $0x90] sm:$0xff] %vm312, 0.0
      %333 = vst.msk [vmem:[#allocation2 + $0x98] sm:$0x3] %vm314, 0.0
      %s334 = scalar_lea.vmem [#allocation2], 16
      %335 = vst.msk [vmem:[%s334 + $0x1] sm:$0xff] %vm312, %v304
      %336 = vst.msk [vmem:[%s334 + $0x11] sm:$0xff] %vm312, %v305
      %337 = vst.msk [vmem:[%s334 + $0x21] sm:$0xff] %vm312, %v306
      %338 = vst.msk [vmem:[%s334 + $0x31] sm:$0xff] %vm312, %v307
      %339 = vst.msk [vmem:[%s334 + $0x41] sm:$0xff] %vm312, %v308
      %340 = vst.msk [vmem:[%s334 + $0x51] sm:$0xff] %vm312, %v309
      %341 = vst.msk [vmem:[%s334 + $0x61] sm:$0xff] %vm312, %v310
      %342 = vst.msk [vmem:[%s334 + $0x71] sm:$0xff] %vm312, %v311
      %v343 = vld [vmem:[#allocation2] sm:$0xff]
      %v344 = vld [vmem:[#allocation2 + $0x10] sm:$0xff]
      %v345 = vld [vmem:[#allocation2 + $0x20] sm:$0xff]
      %v346 = vld [vmem:[#allocation2 + $0x30] sm:$0xff]
      %v347 = vld [vmem:[#allocation2 + $0x40] sm:$0xff]
      %v348 = vld [vmem:[#allocation2 + $0x50] sm:$0xff]
      %v349 = vld [vmem:[#allocation2 + $0x60] sm:$0xff]
      %v350 = vld [vmem:[#allocation2 + $0x70] sm:$0xff]
      %v351 = vld [vmem:[%s3] sm:$0x1]
      %v352 = vperm.slane %v351, 0
      %v353 = vmul.f32 %v343, %v352
      %v354 = vmul.f32 %v344, %v352
      %v355 = vmul.f32 %v345, %v352
      %v356 = vmul.f32 %v346, %v352
      %v357 = vmul.f32 %v347, %v352
      %v358 = vmul.f32 %v348, %v352
      %v359 = vmul.f32 %v349, %v352
      %v360 = vmul.f32 %v350, %v352
      %v361 = vadd.f32 %v353, 0.0
      %v362 = vadd.f32 %v354, 0.0
      %v363 = vadd.f32 %v355, 0.0
      %v364 = vadd.f32 %v356, 0.0
      %v365 = vadd.f32 %v357, 0.0
      %v366 = vadd.f32 %v358, 0.0
      %v367 = vadd.f32 %v359, 0.0
      %v368 = vadd.f32 %v360, 0.0
      %v369 = vld [vmem:[#allocation2 + $0x1] sm:$0xff]
      %v370 = vld [vmem:[#allocation2 + $0x11] sm:$0xff]
      %v371 = vld [vmem:[#allocation2 + $0x21] sm:$0xff]
      %v372 = vld [vmem:[#allocation2 + $0x31] sm:$0xff]
      %v373 = vld [vmem:[#allocation2 + $0x41] sm:$0xff]
      %v374 = vld [vmem:[#allocation2 + $0x51] sm:$0xff]
      %v375 = vld [vmem:[#allocation2 + $0x61] sm:$0xff]
      %v376 = vld [vmem:[#allocation2 + $0x71] sm:$0xff]
      %v377 = vld [vmem:[%s3 + $0x1] sm:$0x1]
      %v378 = vperm.slane %v377, 0
      %v379 = vmul.f32 %v369, %v378
      %v380 = vmul.f32 %v370, %v378
      %v381 = vmul.f32 %v371, %v378
      %v382 = vmul.f32 %v372, %v378
      %v383 = vmul.f32 %v373, %v378
      %v384 = vmul.f32 %v374, %v378
      %v385 = vmul.f32 %v375, %v378
      %v386 = vmul.f32 %v376, %v378
      %v387 = vadd.f32 %v361, %v379
      %v388 = vadd.f32 %v362, %v380
      %v389 = vadd.f32 %v363, %v381
      %v390 = vadd.f32 %v364, %v382
      %v391 = vadd.f32 %v365, %v383
      %v392 = vadd.f32 %v366, %v384
      %v393 = vadd.f32 %v367, %v385
      %v394 = vadd.f32 %v368, %v386
      %v395 = vld [vmem:[#allocation2 + $0x2] sm:$0xff]
      %v396 = vld [vmem:[#allocation2 + $0x12] sm:$0xff]
      %v397 = vld [vmem:[#allocation2 + $0x22] sm:$0xff]
      %v398 = vld [vmem:[#allocation2 + $0x32] sm:$0xff]
      %v399 = vld [vmem:[#allocation2 + $0x42] sm:$0xff]
      %v400 = vld [vmem:[#allocation2 + $0x52] sm:$0xff]
      %v401 = vld [vmem:[#allocation2 + $0x62] sm:$0xff]
      %v402 = vld [vmem:[#allocation2 + $0x72] sm:$0xff]
      %v403 = vld [vmem:[%s3 + $0x2] sm:$0x1]
      %v404 = vperm.slane %v403, 0
      %v405 = vmul.f32 %v395, %v404
      %v406 = vmul.f32 %v396, %v404
      %v407 = vmul.f32 %v397, %v404
      %v408 = vmul.f32 %v398, %v404
      %v409 = vmul.f32 %v399, %v404
      %v410 = vmul.f32 %v400, %v404
      %v411 = vmul.f32 %v401, %v404
      %v412 = vmul.f32 %v402, %v404
      %v413 = vadd.f32 %v387, %v405
      %v414 = vadd.f32 %v388, %v406
      %v415 = vadd.f32 %v389, %v407
      %v416 = vadd.f32 %v390, %v408
      %v417 = vadd.f32 %v391, %v409
      %v418 = vadd.f32 %v392, %v410
      %v419 = vadd.f32 %v393, %v411
      %v420 = vadd.f32 %v394, %v412
      %v421 = vld [vmem:[%s334] sm:$0xff]
      %v422 = vld [vmem:[%s334 + $0x10] sm:$0xff]
      %v423 = vld [vmem:[%s334 + $0x20] sm:$0xff]
      %v424 = vld [vmem:[%s334 + $0x30] sm:$0xff]
      %v425 = vld [vmem:[%s334 + $0x40] sm:$0xff]
      %v426 = vld [vmem:[%s334 + $0x50] sm:$0xff]
      %v427 = vld [vmem:[%s334 + $0x60] sm:$0xff]
      %v428 = vld [vmem:[%s334 + $0x70] sm:$0xff]
      %v429 = vld [vmem:[%s3 + $0x3] sm:$0x1]
      %v430 = vperm.slane %v429, 0
      %v431 = vmul.f32 %v421, %v430
      %v432 = vmul.f32 %v422, %v430
      %v433 = vmul.f32 %v423, %v430
      %v434 = vmul.f32 %v424, %v430
      %v435 = vmul.f32 %v425, %v430
      %v436 = vmul.f32 %v426, %v430
      %v437 = vmul.f32 %v427, %v430
      %v438 = vmul.f32 %v428, %v430
      %v439 = vadd.f32 %v413, %v431
      %v440 = vadd.f32 %v414, %v432
      %v441 = vadd.f32 %v415, %v433
      %v442 = vadd.f32 %v416, %v434
      %v443 = vadd.f32 %v417, %v435
      %v444 = vadd.f32 %v418, %v436
      %v445 = vadd.f32 %v419, %v437
      %v446 = vadd.f32 %v420, %v438
      %v447 = vld [vmem:[%s334 + $0x1] sm:$0xff]
      %v448 = vld [vmem:[%s334 + $0x11] sm:$0xff]
      %v449 = vld [vmem:[%s334 + $0x21] sm:$0xff]
      %v450 = vld [vmem:[%s334 + $0x31] sm:$0xff]
      %v451 = vld [vmem:[%s334 + $0x41] sm:$0xff]
      %v452 = vld [vmem:[%s334 + $0x51] sm:$0xff]
      %v453 = vld [vmem:[%s334 + $0x61] sm:$0xff]
      %v454 = vld [vmem:[%s334 + $0x71] sm:$0xff]
      %v455 = vld [vmem:[%s3 + $0x4] sm:$0x1]
      %v456 = vperm.slane %v455, 0
      %v457 = vmul.f32 %v447, %v456
      %v458 = vmul.f32 %v448, %v456
      %v459 = vmul.f32 %v449, %v456
      %v460 = vmul.f32 %v450, %v456
      %v461 = vmul.f32 %v451, %v456
      %v462 = vmul.f32 %v452, %v456
      %v463 = vmul.f32 %v453, %v456
      %v464 = vmul.f32 %v454, %v456
      %v465 = vadd.f32 %v439, %v457
      %v466 = vadd.f32 %v440, %v458
      %v467 = vadd.f32 %v441, %v459
      %v468 = vadd.f32 %v442, %v460
      %v469 = vadd.f32 %v443, %v461
      %v470 = vadd.f32 %v444, %v462
      %v471 = vadd.f32 %v445, %v463
      %v472 = vadd.f32 %v446, %v464
      %v473 = vld [vmem:[%s334 + $0x2] sm:$0xff]
      %v474 = vld [vmem:[%s334 + $0x12] sm:$0xff]
      %v475 = vld [vmem:[%s334 + $0x22] sm:$0xff]
      %v476 = vld [vmem:[%s334 + $0x32] sm:$0xff]
      %v477 = vld [vmem:[%s334 + $0x42] sm:$0xff]
      %v478 = vld [vmem:[%s334 + $0x52] sm:$0xff]
      %v479 = vld [vmem:[%s334 + $0x62] sm:$0xff]
      %v480 = vld [vmem:[%s334 + $0x72] sm:$0xff]
      %v481 = vld [vmem:[%s3 + $0x5] sm:$0x1]
      %v482 = vperm.slane %v481, 0
      %v483 = vmul.f32 %v473, %v482
      %v484 = vmul.f32 %v474, %v482
      %v485 = vmul.f32 %v475, %v482
      %v486 = vmul.f32 %v476, %v482
      %v487 = vmul.f32 %v477, %v482
      %v488 = vmul.f32 %v478, %v482
      %v489 = vmul.f32 %v479, %v482
      %v490 = vmul.f32 %v480, %v482
      %v491 = vadd.f32 %v465, %v483
      %v492 = vadd.f32 %v466, %v484
      %v493 = vadd.f32 %v467, %v485
      %v494 = vadd.f32 %v468, %v486
      %v495 = vadd.f32 %v469, %v487
      %v496 = vadd.f32 %v470, %v488
      %v497 = vadd.f32 %v471, %v489
      %v498 = vadd.f32 %v472, %v490
      %s499 = scalar_lea.vmem [#allocation2], 32
      %v500 = vld [vmem:[%s499] sm:$0xff]
      %v501 = vld [vmem:[%s499 + $0x10] sm:$0xff]
      %v502 = vld [vmem:[%s499 + $0x20] sm:$0xff]
      %v503 = vld [vmem:[%s499 + $0x30] sm:$0xff]
      %v504 = vld [vmem:[%s499 + $0x40] sm:$0xff]
      %v505 = vld [vmem:[%s499 + $0x50] sm:$0xff]
      %v506 = vld [vmem:[%s499 + $0x60] sm:$0xff]
      %v507 = vld [vmem:[%s499 + $0x70] sm:$0xff]
      %v508 = vld [vmem:[%s3 + $0x6] sm:$0x1]
      %v509 = vperm.slane %v508, 0
      %v510 = vmul.f32 %v500, %v509
      %v511 = vmul.f32 %v501, %v509
      %v512 = vmul.f32 %v502, %v509
      %v513 = vmul.f32 %v503, %v509
      %v514 = vmul.f32 %v504, %v509
      %v515 = vmul.f32 %v505, %v509
      %v516 = vmul.f32 %v506, %v509
      %v517 = vmul.f32 %v507, %v509
      %v518 = vadd.f32 %v491, %v510
      %v519 = vadd.f32 %v492, %v511
      %v520 = vadd.f32 %v493, %v512
      %v521 = vadd.f32 %v494, %v513
      %v522 = vadd.f32 %v495, %v514
      %v523 = vadd.f32 %v496, %v515
      %v524 = vadd.f32 %v497, %v516
      %v525 = vadd.f32 %v498, %v517
      %v526 = vld [vmem:[%s499 + $0x1] sm:$0xff]
      %v527 = vld [vmem:[%s499 + $0x11] sm:$0xff]
      %v528 = vld [vmem:[%s499 + $0x21] sm:$0xff]
      %v529 = vld [vmem:[%s499 + $0x31] sm:$0xff]
      %v530 = vld [vmem:[%s499 + $0x41] sm:$0xff]
      %v531 = vld [vmem:[%s499 + $0x51] sm:$0xff]
      %v532 = vld [vmem:[%s499 + $0x61] sm:$0xff]
      %v533 = vld [vmem:[%s499 + $0x71] sm:$0xff]
      %v534 = vld [vmem:[%s3 + $0x7] sm:$0x1]
      %v535 = vperm.slane %v534, 0
      %v536 = vmul.f32 %v526, %v535
      %v537 = vmul.f32 %v527, %v535
      %v538 = vmul.f32 %v528, %v535
      %v539 = vmul.f32 %v529, %v535
      %v540 = vmul.f32 %v530, %v535
      %v541 = vmul.f32 %v531, %v535
      %v542 = vmul.f32 %v532, %v535
      %v543 = vmul.f32 %v533, %v535
      %v544 = vadd.f32 %v518, %v536
      %v545 = vadd.f32 %v519, %v537
      %v546 = vadd.f32 %v520, %v538
      %v547 = vadd.f32 %v521, %v539
      %v548 = vadd.f32 %v522, %v540
      %v549 = vadd.f32 %v523, %v541
      %v550 = vadd.f32 %v524, %v542
      %v551 = vadd.f32 %v525, %v543
      %v552 = vld [vmem:[%s499 + $0x2] sm:$0xff]
      %v553 = vld [vmem:[%s499 + $0x12] sm:$0xff]
      %v554 = vld [vmem:[%s499 + $0x22] sm:$0xff]
      %v555 = vld [vmem:[%s499 + $0x32] sm:$0xff]
      %v556 = vld [vmem:[%s499 + $0x42] sm:$0xff]
      %v557 = vld [vmem:[%s499 + $0x52] sm:$0xff]
      %v558 = vld [vmem:[%s499 + $0x62] sm:$0xff]
      %v559 = vld [vmem:[%s499 + $0x72] sm:$0xff]
      %v560 = vld [vmem:[%s3 + $0x8] sm:$0x1]
      %v561 = vperm.slane %v560, 0
      %v562 = vmul.f32 %v552, %v561
      %v563 = vmul.f32 %v553, %v561
      %v564 = vmul.f32 %v554, %v561
      %v565 = vmul.f32 %v555, %v561
      %v566 = vmul.f32 %v556, %v561
      %v567 = vmul.f32 %v557, %v561
      %v568 = vmul.f32 %v558, %v561
      %v569 = vmul.f32 %v559, %v561
      %v570 = vadd.f32 %v544, %v562
      %v571 = vadd.f32 %v545, %v563
      %v572 = vadd.f32 %v546, %v564
      %v573 = vadd.f32 %v547, %v565
      %v574 = vadd.f32 %v548, %v566
      %v575 = vadd.f32 %v549, %v567
      %v576 = vadd.f32 %v550, %v568
      %v577 = vadd.f32 %v551, %v569
      %v578 = vpack.c.bf16 %v571, %v570
      %v579 = vpack.c.bf16 %v573, %v572
      %v580 = vpack.c.bf16 %v575, %v574
      %v581 = vpack.c.bf16 %v577, %v576
      %v582 = vld [vmem:[%s4] sm:$0xf]
      %v583 = vpack.c.bf16 %v582, %v582
      %v585 = vsel %vm312, %v578, 0
      %v588 = vsel %vm312, %v579, 0
      %v591 = vsel %vm312, %v580, 0
      %v594 = vsel %vm312, %v581, 0
      %vm596 = vcmask 1041408
      %v598 = vsel %vm596, %v583, 0
      %600 = vmatpush.bf16.msra.mxu0 0
      %601 = vmatpush.bf16.msra.mxu0 0
      %602 = vmatpush.bf16.msra.mxu0 0
      %603 = vmatpush.bf16.msra.mxu0 0
      %604 = vmatpush.bf16.msra.mxu0 0
      %605 = vmatpush.bf16.msra.mxu0 0
      %606 = vmatpush.bf16.msra.mxu0 0
      %607 = vmatpush.bf16.msra.mxu0 %v598
      %608 = vmatmul.bf16.gmra.mxu0 %v585
      %v609 = vpop.f32.mrf.mxu0
      %v610 = vadd.f32 0.0, %v609
      %v611 = vpop.f32.mrf.mxu0
      %v612 = vadd.f32 0.0, %v611
      %613 = vmatmul.bf16.gmra.mxu0 %v588
      %v614 = vpop.f32.mrf.mxu0
      %v615 = vadd.f32 0.0, %v614
      %v616 = vpop.f32.mrf.mxu0
      %v617 = vadd.f32 0.0, %v616
      %618 = vmatmul.bf16.gmra.mxu0 %v591
      %v619 = vpop.f32.mrf.mxu0
      %v620 = vadd.f32 0.0, %v619
      %v621 = vpop.f32.mrf.mxu0
      %v622 = vadd.f32 0.0, %v621
      %623 = vmatmul.bf16.gmra.mxu0 %v594
      %v624 = vpop.f32.mrf.mxu0
      %v625 = vadd.f32 0.0, %v624
      %v626 = vpop.f32.mrf.mxu0
      %v627 = vadd.f32 0.0, %v626
      %628 = vdwg.mxu0
      %vm629 = vcmask 64512
      %v630 = vsel %vm629, %v610, 0.0
      %v631 = vsel %vm629, %v612, 0.0
      %v632 = vadd.f32 %v630, %v631
      %v633 = vsel %vm629, %v615, 0.0
      %v634 = vadd.f32 %v632, %v633
      %v635 = vsel %vm629, %v617, 0.0
      %v636 = vadd.f32 %v634, %v635
      %v637 = vsel %vm629, %v620, 0.0
      %v638 = vadd.f32 %v636, %v637
      %v639 = vsel %vm629, %v622, 0.0
      %v640 = vadd.f32 %v638, %v639
      %v641 = vsel %vm629, %v625, 0.0
      %v642 = vadd.f32 %v640, %v641
      %v643 = vsel %vm629, %v627, 0.0
      %v644 = vadd.f32 %v642, %v643
      %v645 = vrot.slane %v644, 4
      %v646 = vadd.f32 %v644, %v645
      %v647 = vrot.slane %v646, 2
      %v648 = vadd.f32 %v646, %v647
      %v649 = vrot.slane %v648, 1
      %v650 = vadd.f32 %v648, %v649
      %vm651 = vcmask 57344
      %652 = vst.msk [vmem:[%s262] sm:$0x1] %vm651, %v650
      %v653 = vmul.f32 %v610, %v610
      %v654 = vmul.f32 %v612, %v612
      %v655 = vmul.f32 %v615, %v615
      %v656 = vmul.f32 %v617, %v617
      %v657 = vmul.f32 %v620, %v620
      %v658 = vmul.f32 %v622, %v622
      %v659 = vmul.f32 %v625, %v625
      %v660 = vmul.f32 %v627, %v627
      %v661 = vsel %vm629, %v653, 0.0
      %v662 = vsel %vm629, %v654, 0.0
      %v663 = vadd.f32 %v661, %v662
      %v664 = vsel %vm629, %v655, 0.0
      %v665 = vadd.f32 %v663, %v664
      %v666 = vsel %vm629, %v656, 0.0
      %v667 = vadd.f32 %v665, %v666
      %v668 = vsel %vm629, %v657, 0.0
      %v669 = vadd.f32 %v667, %v668
      %v670 = vsel %vm629, %v658, 0.0
      %v671 = vadd.f32 %v669, %v670
      %v672 = vsel %vm629, %v659, 0.0
      %v673 = vadd.f32 %v671, %v672
      %v674 = vsel %vm629, %v660, 0.0
      %v675 = vadd.f32 %v673, %v674
      %v676 = vrot.slane %v675, 4
      %v677 = vadd.f32 %v675, %v676
      %v678 = vrot.slane %v677, 2
      %v679 = vadd.f32 %v677, %v678
      %v680 = vrot.slane %v679, 1
      %v681 = vadd.f32 %v679, %v680
      %682 = vst.msk [vmem:[%s262 + $0x1] sm:$0x1] %vm651, %v681
      %v683 = vpack.c.bf16 %v610, %v610
      %v684 = vpack.c.bf16 %v612, %v612
      %v685 = vpack.c.bf16 %v615, %v615
      %v686 = vpack.c.bf16 %v617, %v617
      %v687 = vpack.c.bf16 %v620, %v620
      %v688 = vpack.c.bf16 %v622, %v622
      %v689 = vpack.c.bf16 %v625, %v625
      %v690 = vpack.c.bf16 %v627, %v627
      %vm691 = vcmask 60416
      %692 = vst.msk [vmem:[%s258] sm:$0xf] %vm691, %v683
      %693 = vst.msk [vmem:[%s258 + $0x4] sm:$0xf] %vm691, %v684
      %694 = vst.msk [vmem:[%s258 + $0x8] sm:$0xf] %vm691, %v685
      %695 = vst.msk [vmem:[%s258 + $0xc] sm:$0xf] %vm691, %v686
      %696 = vst.msk [vmem:[%s258 + $0x10] sm:$0xf] %vm691, %v687
      %697 = vst.msk [vmem:[%s258 + $0x14] sm:$0xf] %vm691, %v688
      %698 = vst.msk [vmem:[%s258 + $0x18] sm:$0xf] %vm691, %v689
      %699 = vst.msk [vmem:[%s258 + $0x1c] sm:$0xf] %vm691, %v690
      %p700 = scmp.lt.s32.totalorder %s18, 1
      %s701 = scalar_select %p700, %s18, 1
      %s702 = smul.addr %s701, 8
      %s703 = smul.addr %s702, 4
      %s704 = scalar_lea.vmem %s5, %s703
      %p705 = scmp.lt.s32.totalorder %s18, 1
      %s706 = scalar_select %p705, %s18, 1
      %s707 = smul.addr %s706, 2
      %s708 = scalar_lea.vmem %s6, %s707
      // Predicated region
      $region41: #{sepconv_forward.4} parent=39 // pred_check
        %p709 = pneg %p146
      $region42: #{sepconv_forward.4} parent=39 // pred_check_branch
        %711 = sbr.rel (%p709) target = $region44
      $region43: #{sepconv_forward.4} parent=39 // pred_region
        _
      $region44: #{sepconv_forward.4} parent=39 // pred_fallthru
        _
      // Predicated region
      $region45: #{sepconv_forward.4} parent=39 // pred_check
        %p712 = pneg %p172
      $region46: #{sepconv_forward.4} parent=39 // pred_check_branch
        %714 = sbr.rel (%p712) target = $region48
      $region47: #{sepconv_forward.4} parent=39 // pred_region
        _
      $region48: #{sepconv_forward.4} parent=39 // pred_fallthru
        _
    $region40: #{sepconv_forward.4} parent=5 // pred_fallthru
      _
    %p715 = scmp.le.s32.totalorder 2, %s13
    // Predicated region
    $region49: #{sepconv_forward.4} parent=5 // pred_check
      %p716 = pneg %p715
    $region50: #{sepconv_forward.4} parent=5 // pred_check_branch
      %718 = sbr.rel (%p716) target = $region52
    $region51: #{sepconv_forward.4} parent=5 // pred_region
      %s719 = ssub.s32 %s13, 2
      // Predicated region
      $region53: #{sepconv_forward.4} parent=51 // pred_check
        %p720 = pneg %p152
      $region54: #{sepconv_forward.4} parent=51 // pred_check_branch
        %722 = sbr.rel (%p720) target = $region56
      $region55: #{sepconv_forward.4} parent=51 // pred_region
        %p723 = scmp.lt.s32.totalorder %s19, 1
        %s724 = scalar_select %p723, %s19, 1
        %s725 = smul.addr %s724, 8
        %s726 = smul.addr %s725, 4
        %s727 = scalar_lea.vmem %s5, %s726
      $region56: #{sepconv_forward.4} parent=51 // pred_fallthru
        _
      // Predicated region
      $region57: #{sepconv_forward.4} parent=51 // pred_check
        %p728 = pneg %p178
      $region58: #{sepconv_forward.4} parent=51 // pred_check_branch
        %730 = sbr.rel (%p728) target = $region60
      $region59: #{sepconv_forward.4} parent=51 // pred_region
        %p731 = scmp.lt.s32.totalorder %s19, 1
        %s732 = scalar_select %p731, %s19, 1
        %s733 = smul.addr %s732, 2
        %s734 = scalar_lea.vmem %s6, %s733
      $region60: #{sepconv_forward.4} parent=51 // pred_fallthru
        _
    $region52: #{sepconv_forward.4} parent=5 // pred_fallthru
      _
  $region6: #{sepconv_forward.4} parent=0 // loop_footer
    %s17 = sadd.s32 1, %s13
  $region7: #{sepconv_forward.4} parent=0 // loop_footer_branch
    %12 = sbr.rel target = $region3
  $region8: #{sepconv_forward.4} parent=0 // loop_exit
    _

</llo_original>
